<compile_context>
chip_gen: v5e
topology: v5e:2x2
jax: 0.10.0
libtpu: 0.0.40
codegen_flags: <defaults>
</compile_context>

<pallas_src>
import jax
import jax.numpy as jnp
from jax import lax
from jax.experimental import pallas as pl
from jax.experimental.pallas import tpu as pltpu

LEAKY_SLOPE = 0.01            # torch F.leaky_relu default (inside dgl EGATConv)
SELU_ALPHA = 1.6732632423543772
SELU_SCALE = 1.0507009873554805
BF16 = jnp.bfloat16
F32 = jnp.float32


def _mm(a, b):
    """Standard (m,k)@(k,n) matmul, f32 accumulation on the MXU."""
    return lax.dot_general(a, b, (((1,), (0,)), ((), ())),
                           preferred_element_type=F32)


def _mm_t_lhs(a, b):
    """a^T @ b : contract dim 0 of both operands. (k,m),(k,n) -> (m,n)."""
    return lax.dot_general(a, b, (((0,), (0,)), ((), ())),
                           preferred_element_type=F32)


def _charge_increment_kernel(SD_ref, hnT_ref, he_ref, ch_ref,
                             wcat_ref, wf_ref, attnT_ref, be_ref,
                             w1_ref, b1_ref, w2_ref, b2_ref,
                             out_ref):
    Dn, N_pad = hnT_ref.shape        # node hidden dim, padded node count
    De = wf_ref.shape[-1]            # edge hidden dim
    W2 = De + Dn + 1                 # width of one half of the fused projection

    SD = SD_ref[...]                 # (E, 2N) bf16: [S | D] one-hot incidence
    D = SD[:, N_pad:]                # (E, N) destination incidence (aligned slice)
    hnT = hnT_ref[...]               # (Dn, N) bf16 node features (transposed)
    he = he_ref[...]                 # (E, De) bf16 edge features

    # constant row that injects the "1" column (index De+Dn) into the projection
    ones_col = (lax.broadcasted_iota(jnp.int32, (1, 2 * W2), 1)
                == (De + Dn)).astype(F32)

    for layer in range(3):                           # static unroll (3 EGATConv layers)
        # fused node projection, columns: [fc_ni(De) | fc_node(Dn) | 1 | fc_nj(De) | 0s]
        proj = _mm_t_lhs(hnT, wcat_ref[layer]) + ones_col        # (N, 2*W2) f32
        # single K=2N incidence matmul: SD @ [[f_ni | h_src | 1]; [f_nj | 0 | 0]]
        R = jnp.concatenate([proj[:, :W2], proj[:, W2:]],
                            axis=0).astype(BF16)                 # (2N, W2)
        agg = _mm(SD, R)                                         # (E, W2) f32
        f_e = _mm(he, wf_ref[layer])                             # (E, De) f32
        lin = agg[:, :De] + f_e + be_ref[layer]
        f_out = jnp.where(lin > 0, lin, LEAKY_SLOPE * lin)       # leaky_relu
        he = jnp.maximum(f_out, 0.0).astype(BF16)                # F.relu -> next edge feats

        if layer < 2:   # node output of the last conv is never used downstream
            h_src_ind = agg[:, De:]                              # (E, Dn+1): [h_src_e | 1{real edge}]
            e = _mm(f_out.astype(BF16), attnT_ref[layer])        # (E, 1) attention logits
            # edge softmax is shift invariant -> one global max is enough
            m = jnp.max(e, axis=0, keepdims=True)                # (1, 1)
            ex = jnp.exp(e - m)                                  # (E, 1), <= 1
            # fused numerator|denominator aggregation over destinations
            msg = (ex * h_src_ind).astype(BF16)                  # (E, Dn+1): [ex*h_src | ex]
            nd = _mm_t_lhs(msg, D)                               # (Dn+1, N)
            den = jnp.maximum(nd[Dn:Dn + 1, :], 1e-20)           # (1, N)
            h_newT = nd[:Dn, :] * pl.reciprocal(den, approx=True)
            hnT = jnp.maximum(h_newT, 0.0).astype(BF16)          # F.relu -> next node feats

    # edge MLP: Linear -> SELU -> Linear (per-edge charge increment)
    h1 = _mm(he, w1_ref[...]) + b1_ref[...]                      # (E, 2*De) f32
    h1 = SELU_SCALE * jnp.where(h1 > 0, h1, SELU_ALPHA * (jnp.exp(h1) - 1.0))
    inc = _mm(h1.astype(BF16), w2_ref[...]) + b2_ref[...]        # (E, 1) f32

    # signed scatter fused into one (1,E)@(E,2N): +inc to dst, -inc to src
    sc = _mm_t_lhs(inc.astype(BF16), SD)                         # (1, 2N)
    out_ref[...] = sc[:, N_pad:] - sc[:, :N_pad] + ch_ref[...]   # (1, N)


def init_params(key, in_dim_node, in_dim_edge, hidden_dim_node, hidden_dim_edge,
                n_head=1):
    assert n_head == 1  # TODO(synk): multi-head would add a heads axis to attn / reshapes
    params = []
    layer_in_dims = [(in_dim_node, in_dim_edge),
                     (hidden_dim_node * n_head, hidden_dim_edge * n_head),
                     (hidden_dim_node * n_head, hidden_dim_edge * n_head)]
    keys = iter(jax.random.split(key, 3 * 5 + 2))
    for dn_in, de_in in layer_in_dims:
        wni = 0.1 * jax.random.normal(next(keys), (dn_in, hidden_dim_edge), F32)
        wnj = 0.1 * jax.random.normal(next(keys), (dn_in, hidden_dim_edge), F32)
        wf = 0.1 * jax.random.normal(next(keys), (de_in, hidden_dim_edge), F32)
        attn = 0.1 * jax.random.normal(next(keys), (1, hidden_dim_edge), F32)
        be = jnp.zeros((1, hidden_dim_edge), F32)
        wn = 0.1 * jax.random.normal(next(keys), (dn_in, hidden_dim_node), F32)
        params += [wni, wnj, wf, attn, be, wn]
    # MLPModel: normal(std=0.5) weights, zero biases
    hidden = 2 * hidden_dim_edge
    w1 = 0.5 * jax.random.normal(next(keys), (hidden_dim_edge * n_head, hidden), F32)
    b1 = jnp.zeros((1, hidden), F32)
    w2 = 0.5 * jax.random.normal(next(keys), (hidden, 1), F32)
    b2 = jnp.zeros((1, 1), F32)
    params += [w1, b1, w2, b2]
    return params


def _round_up(x, m):
    return (x + m - 1) // m * m


def charge_increment_forward(src, dst, feats_node, feats_edge, charges_init, params):
    N, in_node = feats_node.shape
    E, in_edge = feats_edge.shape
    (wni0, wnj0, wf0, attn0, be0, wn0,
     wni1, wnj1, wf1, attn1, be1, wn1,
     wni2, wnj2, wf2, attn2, be2, wn2,
     w1, b1, w2, b2) = params
    De = wf0.shape[1]     # hidden_dim_edge
    Dn = wn0.shape[1]     # hidden_dim_node
    # TODO(synk): fused weight slabs assume hidden dims >= input feature dims.
    assert Dn >= in_node and De >= in_edge

    N_pad = _round_up(N, 128)     # lane-dense incidence / output
    E_pad = _round_up(E, 16)      # bf16 sublane packing
    W2 = De + Dn + 1

    # bf16 one-hot incidence slab [S | D] via vectorized iota compare (no XLA scatter)
    col = lax.broadcasted_iota(jnp.int32, (E_pad, N_pad), 1)
    src_p = jnp.full((E_pad,), -1, jnp.int32).at[:E].set(src.astype(jnp.int32))
    dst_p = jnp.full((E_pad,), -1, jnp.int32).at[:E].set(dst.astype(jnp.int32))
    S = (col == src_p[:, None]).astype(BF16)
    D = (col == dst_p[:, None]).astype(BF16)
    SD = jnp.concatenate([S, D], axis=1)                          # (E_pad, 2*N_pad)

    hnT0 = jnp.zeros((Dn, N_pad), BF16).at[:in_node, :N].set(
        feats_node.astype(BF16).T)
    he0 = jnp.zeros((E_pad, De), BF16).at[:E, :in_edge].set(feats_edge.astype(BF16))
    ch = jnp.zeros((1, N_pad), F32).at[0, :N].set(charges_init.astype(F32))

    # pack/fuse per-layer weights into a few slabs
    # column layout: [fc_ni(De) | fc_node(Dn) | 0(ones-col) | fc_nj(De) | 0(Dn+1)]
    def fuse(wni, wnj, wn, wf_, attn, be_):
        k = wni.shape[0]
        wcat_ = jnp.zeros((Dn, 2 * W2), F32)
        wcat_ = (wcat_.at[:k, :De].set(wni)
                      .at[:k, De:De + Dn].set(wn)
                      .at[:k, W2:W2 + De].set(wnj))
        wf_p = jnp.zeros((De, De), F32).at[:wf_.shape[0], :].set(wf_)
        return wcat_, wf_p, attn.reshape(De, 1), be_.reshape(1, De)

    packed = [fuse(wni0, wnj0, wn0, wf0, attn0, be0),
              fuse(wni1, wnj1, wn1, wf1, attn1, be1),
              fuse(wni2, wnj2, wn2, wf2, attn2, be2)]
    wcat = jnp.stack([p[0] for p in packed]).astype(BF16)    # (3, Dn, 2*W2)
    wf = jnp.stack([p[1] for p in packed]).astype(BF16)      # (3, De, De)
    attnT = jnp.stack([p[2] for p in packed]).astype(BF16)   # (3, De, 1)
    be = jnp.stack([p[3] for p in packed]).astype(F32)       # (3, 1, De)

    inputs = [SD, hnT0, he0, ch, wcat, wf, attnT, be,
              w1.astype(BF16), b1.reshape(1, -1).astype(F32),
              w2.astype(BF16), b2.reshape(1, -1).astype(F32)]

    # --- VMEM budget: physical capacity minus ~15% headroom, no double-buffer
    # factor (no grid, whole arrays resident once).
    try:
        vmem_cap = int(pltpu.get_tpu_info().vmem_capacity_bytes)
    except Exception:
        vmem_cap = 64 * 2 ** 20
    in_bytes = sum(int(x.size) * x.dtype.itemsize for x in inputs)
    out_bytes = 4 * N_pad
    temp_bytes = (4 * N_pad * 3 * W2                      # proj + stacked RHS R
                  + 4 * E_pad * (W2 + 4 * De + Dn + 8)    # agg/f_e/lin/f_out/e/ex/msg
                  + 4 * (Dn + 2) * N_pad                  # nd / h_newT
                  + 4 * E_pad * 2 * De)                   # MLP hidden
    budget = in_bytes + out_bytes + temp_bytes
    vmem_limit = int(min(int(0.85 * vmem_cap), max(budget, 16 * 2 ** 20)))

    # --- advisory cost estimate so XLA can overlap wrapper-side prep
    flops = 0
    for layer in range(3):
        flops += 2 * N_pad * Dn * 2 * W2                  # fused node projection
        flops += 2 * E_pad * 2 * N_pad * W2               # SD @ R
        flops += 2 * E_pad * De * De                      # edge projection
        if layer < 2:
            flops += 2 * E_pad * De                       # attention logits
            flops += 2 * E_pad * N_pad * (Dn + 1)         # softmax aggregation
    flops += 2 * E_pad * De * 2 * De + 2 * E_pad * 2 * De  # edge MLP
    flops += 2 * E_pad * 2 * N_pad                        # signed scatter
    transcendentals = 2 * E_pad + E_pad * 2 * De          # softmax exp + SELU exp
    cost = pl.CostEstimate(flops=int(flops), transcendentals=int(transcendentals),
                           bytes_accessed=int(in_bytes + out_bytes))

    vmem = pl.BlockSpec(memory_space=pltpu.MemorySpace.VMEM)
    out = pl.pallas_call(
        _charge_increment_kernel,
        out_shape=jax.ShapeDtypeStruct((1, N_pad), F32),
        in_specs=[vmem] * len(inputs),
        out_specs=vmem,
        compiler_params=pltpu.CompilerParams(vmem_limit_bytes=vmem_limit),
        cost_estimate=cost,
    )(*inputs)
    return out[0, :N]


if __name__ == "__main__":
    key = jax.random.PRNGKey(0)
    N, E = 16, 32
    in_dim_node, in_dim_edge = 8, 4
    hidden_dim_node, hidden_dim_edge = 16, 8

    k_src, k_dst, k_hn, k_he, k_ch, k_par = jax.random.split(key, 6)
    src = jax.random.randint(k_src, (E,), 0, N)
    dst = jax.random.randint(k_dst, (E,), 0, N)
    feats_node = jax.random.normal(k_hn, (N, in_dim_node), F32)
    feats_edge = jax.random.normal(k_he, (E, in_dim_edge), F32)
    charges_init = 0.1 * jax.random.normal(k_ch, (N,), F32)

    params = init_params(k_par, in_dim_node, in_dim_edge,
                         hidden_dim_node, hidden_dim_edge, n_head=1)

    out = charge_increment_forward(src, dst, feats_node, feats_edge,
                                   charges_init, params)
    jax.block_until_ready(out)
    assert out.shape == (N,)
    assert bool(jnp.all(jnp.isfinite(out)))
    print("KERNEL_OK")
</pallas_src>

<mosaic_0001>
module attributes {stable_mosaic.version = 11 : i64} {
  func.func @_charge_increment_kernel(%arg0: memref<32x256xbf16, #tpu.memory_space<vmem>>, %arg1: memref<16x128xbf16, #tpu.memory_space<vmem>>, %arg2: memref<32x8xbf16, #tpu.memory_space<vmem>>, %arg3: memref<1x128xf32, #tpu.memory_space<vmem>>, %arg4: memref<3x16x50xbf16, #tpu.memory_space<vmem>>, %arg5: memref<3x8x8xbf16, #tpu.memory_space<vmem>>, %arg6: memref<3x8x1xbf16, #tpu.memory_space<vmem>>, %arg7: memref<3x1x8xf32, #tpu.memory_space<vmem>>, %arg8: memref<8x16xbf16, #tpu.memory_space<vmem>>, %arg9: memref<1x16xf32, #tpu.memory_space<vmem>>, %arg10: memref<16x1xbf16, #tpu.memory_space<vmem>>, %arg11: memref<1x1xf32, #tpu.memory_space<vmem>>, %arg12: memref<1x128xf32, #tpu.memory_space<vmem>>) attributes {dimension_semantics = [], scalar_prefetch = 0 : i64, scratch_operands = 0 : i64, tpu.core_type = #tpu.core_type<tc>} {
    %c0 = arith.constant 0 : index
    %c0_0 = arith.constant 0 : index
    %0 = vector.load %arg0[%c0, %c0_0] : memref<32x256xbf16, #tpu.memory_space<vmem>>, vector<32x256xbf16>
    %1 = vector.extract_strided_slice %0 {offsets = [0, 128], sizes = [32, 128], strides = [1, 1]} : vector<32x256xbf16> to vector<32x128xbf16>
    %c0_1 = arith.constant 0 : index
    %c0_2 = arith.constant 0 : index
    %2 = vector.load %arg1[%c0_1, %c0_2] : memref<16x128xbf16, #tpu.memory_space<vmem>>, vector<16x128xbf16>
    %c0_3 = arith.constant 0 : index
    %c0_4 = arith.constant 0 : index
    %3 = vector.load %arg2[%c0_3, %c0_4] : memref<32x8xbf16, #tpu.memory_space<vmem>>, vector<32x8xbf16>
    %4 = tpu.iota {dimensions = array<i32: 1>} : vector<1x50xi32>
    %c24_i32 = arith.constant 24 : i32
    %5 = vector.broadcast %c24_i32 : i32 to vector<1x50xi32>
    %6 = arith.cmpi eq, %4, %5 : vector<1x50xi32>
    %7 = arith.extui %6 : vector<1x50xi1> to vector<1x50xi32>
    %8 = arith.sitofp %7 : vector<1x50xi32> to vector<1x50xf32>
    %c0_5 = arith.constant 0 : index
    %c0_6 = arith.constant 0 : index
    %c0_7 = arith.constant 0 : index
    %9 = vector.load %arg4[%c0_5, %c0_6, %c0_7] : memref<3x16x50xbf16, #tpu.memory_space<vmem>>, vector<1x16x50xbf16>
    %10 = vector.shape_cast %9 : vector<1x16x50xbf16> to vector<16x50xbf16>
    %cst = arith.constant dense<0.000000e+00> : vector<128x50xf32>
    %11 = tpu.matmul %2, %10, %cst {dimension_numbers = #tpu.dot_dimension_numbers<[0], [0], [1], [1], [0, 1, 1, 1], [], []>} : vector<16x128xbf16>, vector<16x50xbf16>, vector<128x50xf32> -> vector<128x50xf32>
    %12 = vector.broadcast %8 : vector<1x50xf32> to vector<128x50xf32>
    %13 = arith.addf %11, %12 : vector<128x50xf32>
    %14 = vector.extract_strided_slice %13 {offsets = [0, 0], sizes = [128, 25], strides = [1, 1]} : vector<128x50xf32> to vector<128x25xf32>
    %15 = vector.extract_strided_slice %13 {offsets = [0, 25], sizes = [128, 25], strides = [1, 1]} : vector<128x50xf32> to vector<128x25xf32>
    %16 = tpu.concatenate %14, %15 in 0 : vector<128x25xf32>, vector<128x25xf32> -> vector<256x25xf32>
    %17 = arith.truncf %16 : vector<256x25xf32> to vector<256x25xbf16>
    %cst_8 = arith.constant dense<0.000000e+00> : vector<32x25xf32>
    %18 = tpu.matmul %0, %17, %cst_8 {dimension_numbers = #tpu.dot_dimension_numbers<[1], [0], [0], [1], [0, 0, 1, 1], [], []>} : vector<32x256xbf16>, vector<256x25xbf16>, vector<32x25xf32> -> vector<32x25xf32>
    %c0_9 = arith.constant 0 : index
    %c0_10 = arith.constant 0 : index
    %c0_11 = arith.constant 0 : index
    %19 = vector.load %arg5[%c0_9, %c0_10, %c0_11] : memref<3x8x8xbf16, #tpu.memory_space<vmem>>, vector<1x8x8xbf16>
    %20 = vector.shape_cast %19 : vector<1x8x8xbf16> to vector<8x8xbf16>
    %cst_12 = arith.constant dense<0.000000e+00> : vector<32x8xf32>
    %21 = tpu.matmul %3, %20, %cst_12 {dimension_numbers = #tpu.dot_dimension_numbers<[1], [0], [0], [1], [0, 0, 1, 1], [], []>} : vector<32x8xbf16>, vector<8x8xbf16>, vector<32x8xf32> -> vector<32x8xf32>
    %22 = vector.extract_strided_slice %18 {offsets = [0, 0], sizes = [32, 8], strides = [1, 1]} : vector<32x25xf32> to vector<32x8xf32>
    %23 = arith.addf %22, %21 : vector<32x8xf32>
    %c0_13 = arith.constant 0 : index
    %c0_14 = arith.constant 0 : index
    %c0_15 = arith.constant 0 : index
    %24 = vector.load %arg7[%c0_13, %c0_14, %c0_15] : memref<3x1x8xf32, #tpu.memory_space<vmem>>, vector<1x1x8xf32>
    %25 = vector.shape_cast %24 : vector<1x1x8xf32> to vector<1x8xf32>
    %26 = vector.broadcast %25 : vector<1x8xf32> to vector<32x8xf32>
    %27 = arith.addf %23, %26 : vector<32x8xf32>
    %cst_16 = arith.constant 0.000000e+00 : f32
    %28 = vector.broadcast %cst_16 : f32 to vector<32x8xf32>
    %29 = arith.cmpf ogt, %27, %28 : vector<32x8xf32>
    %cst_17 = arith.constant 0.00999999977 : f32
    %30 = vector.broadcast %cst_17 : f32 to vector<32x8xf32>
    %31 = arith.mulf %30, %27 : vector<32x8xf32>
    %32 = arith.select %29, %27, %31 : vector<32x8xi1>, vector<32x8xf32>
    %cst_18 = arith.constant 0.000000e+00 : f32
    %33 = vector.broadcast %cst_18 : f32 to vector<32x8xf32>
    %34 = arith.maximumf %32, %33 : vector<32x8xf32>
    %35 = arith.truncf %34 : vector<32x8xf32> to vector<32x8xbf16>
    %36 = vector.extract_strided_slice %18 {offsets = [0, 8], sizes = [32, 17], strides = [1, 1]} : vector<32x25xf32> to vector<32x17xf32>
    %37 = arith.truncf %32 : vector<32x8xf32> to vector<32x8xbf16>
    %c0_19 = arith.constant 0 : index
    %c0_20 = arith.constant 0 : index
    %c0_21 = arith.constant 0 : index
    %38 = vector.load %arg6[%c0_19, %c0_20, %c0_21] : memref<3x8x1xbf16, #tpu.memory_space<vmem>>, vector<1x8x1xbf16>
    %39 = vector.shape_cast %38 : vector<1x8x1xbf16> to vector<8x1xbf16>
    %cst_22 = arith.constant dense<0.000000e+00> : vector<32x1xf32>
    %40 = tpu.matmul %37, %39, %cst_22 {dimension_numbers = #tpu.dot_dimension_numbers<[1], [0], [0], [1], [0, 0, 1, 1], [], []>} : vector<32x8xbf16>, vector<8x1xbf16>, vector<32x1xf32> -> vector<32x1xf32>
    %cst_23 = arith.constant dense<0xFF800000> : vector<1xf32>
    %41 = vector.multi_reduction <maximumf>, %40, %cst_23 [0] : vector<32x1xf32> to vector<1xf32>
    %42 = vector.shape_cast %41 : vector<1xf32> to vector<1x1xf32>
    %43 = vector.broadcast %42 : vector<1x1xf32> to vector<32x1xf32>
    %44 = arith.subf %40, %43 : vector<32x1xf32>
    %45 = math.exp %44 : vector<32x1xf32>
    %46 = vector.broadcast %45 : vector<32x1xf32> to vector<32x17xf32>
    %47 = arith.mulf %46, %36 : vector<32x17xf32>
    %48 = arith.truncf %47 : vector<32x17xf32> to vector<32x17xbf16>
    %cst_24 = arith.constant dense<0.000000e+00> : vector<17x128xf32>
    %49 = tpu.matmul %48, %1, %cst_24 {dimension_numbers = #tpu.dot_dimension_numbers<[0], [0], [1], [1], [0, 1, 1, 1], [], []>} : vector<32x17xbf16>, vector<32x128xbf16>, vector<17x128xf32> -> vector<17x128xf32>
    %50 = vector.extract_strided_slice %49 {offsets = [16, 0], sizes = [1, 128], strides = [1, 1]} : vector<17x128xf32> to vector<1x128xf32>
    %cst_25 = arith.constant 9.99999968E-21 : f32
    %51 = vector.broadcast %cst_25 : f32 to vector<1x128xf32>
    %52 = arith.maximumf %50, %51 : vector<1x128xf32>
    %53 = vector.extract_strided_slice %49 {offsets = [0, 0], sizes = [16, 128], strides = [1, 1]} : vector<17x128xf32> to vector<16x128xf32>
    %54 = tpu.reciprocal %52 {approx = true} : vector<1x128xf32> -> vector<1x128xf32>
    %55 = vector.broadcast %54 : vector<1x128xf32> to vector<16x128xf32>
    %56 = arith.mulf %53, %55 : vector<16x128xf32>
    %cst_26 = arith.constant 0.000000e+00 : f32
    %57 = vector.broadcast %cst_26 : f32 to vector<16x128xf32>
    %58 = arith.maximumf %56, %57 : vector<16x128xf32>
    %59 = arith.truncf %58 : vector<16x128xf32> to vector<16x128xbf16>
    %c1 = arith.constant 1 : index
    %c0_27 = arith.constant 0 : index
    %c0_28 = arith.constant 0 : index
    %60 = vector.load %arg4[%c1, %c0_27, %c0_28] : memref<3x16x50xbf16, #tpu.memory_space<vmem>>, vector<1x16x50xbf16>
    %61 = vector.shape_cast %60 : vector<1x16x50xbf16> to vector<16x50xbf16>
    %cst_29 = arith.constant dense<0.000000e+00> : vector<128x50xf32>
    %62 = tpu.matmul %59, %61, %cst_29 {dimension_numbers = #tpu.dot_dimension_numbers<[0], [0], [1], [1], [0, 1, 1, 1], [], []>} : vector<16x128xbf16>, vector<16x50xbf16>, vector<128x50xf32> -> vector<128x50xf32>
    %63 = vector.broadcast %8 : vector<1x50xf32> to vector<128x50xf32>
    %64 = arith.addf %62, %63 : vector<128x50xf32>
    %65 = vector.extract_strided_slice %64 {offsets = [0, 0], sizes = [128, 25], strides = [1, 1]} : vector<128x50xf32> to vector<128x25xf32>
    %66 = vector.extract_strided_slice %64 {offsets = [0, 25], sizes = [128, 25], strides = [1, 1]} : vector<128x50xf32> to vector<128x25xf32>
    %67 = tpu.concatenate %65, %66 in 0 : vector<128x25xf32>, vector<128x25xf32> -> vector<256x25xf32>
    %68 = arith.truncf %67 : vector<256x25xf32> to vector<256x25xbf16>
    %cst_30 = arith.constant dense<0.000000e+00> : vector<32x25xf32>
    %69 = tpu.matmul %0, %68, %cst_30 {dimension_numbers = #tpu.dot_dimension_numbers<[1], [0], [0], [1], [0, 0, 1, 1], [], []>} : vector<32x256xbf16>, vector<256x25xbf16>, vector<32x25xf32> -> vector<32x25xf32>
    %c1_31 = arith.constant 1 : index
    %c0_32 = arith.constant 0 : index
    %c0_33 = arith.constant 0 : index
    %70 = vector.load %arg5[%c1_31, %c0_32, %c0_33] : memref<3x8x8xbf16, #tpu.memory_space<vmem>>, vector<1x8x8xbf16>
    %71 = vector.shape_cast %70 : vector<1x8x8xbf16> to vector<8x8xbf16>
    %cst_34 = arith.constant dense<0.000000e+00> : vector<32x8xf32>
    %72 = tpu.matmul %35, %71, %cst_34 {dimension_numbers = #tpu.dot_dimension_numbers<[1], [0], [0], [1], [0, 0, 1, 1], [], []>} : vector<32x8xbf16>, vector<8x8xbf16>, vector<32x8xf32> -> vector<32x8xf32>
    %73 = vector.extract_strided_slice %69 {offsets = [0, 0], sizes = [32, 8], strides = [1, 1]} : vector<32x25xf32> to vector<32x8xf32>
    %74 = arith.addf %73, %72 : vector<32x8xf32>
    %c1_35 = arith.constant 1 : index
    %c0_36 = arith.constant 0 : index
    %c0_37 = arith.constant 0 : index
    %75 = vector.load %arg7[%c1_35, %c0_36, %c0_37] : memref<3x1x8xf32, #tpu.memory_space<vmem>>, vector<1x1x8xf32>
    %76 = vector.shape_cast %75 : vector<1x1x8xf32> to vector<1x8xf32>
    %77 = vector.broadcast %76 : vector<1x8xf32> to vector<32x8xf32>
    %78 = arith.addf %74, %77 : vector<32x8xf32>
    %cst_38 = arith.constant 0.000000e+00 : f32
    %79 = vector.broadcast %cst_38 : f32 to vector<32x8xf32>
    %80 = arith.cmpf ogt, %78, %79 : vector<32x8xf32>
    %cst_39 = arith.constant 0.00999999977 : f32
    %81 = vector.broadcast %cst_39 : f32 to vector<32x8xf32>
    %82 = arith.mulf %81, %78 : vector<32x8xf32>
    %83 = arith.select %80, %78, %82 : vector<32x8xi1>, vector<32x8xf32>
    %cst_40 = arith.constant 0.000000e+00 : f32
    %84 = vector.broadcast %cst_40 : f32 to vector<32x8xf32>
    %85 = arith.maximumf %83, %84 : vector<32x8xf32>
    %86 = arith.truncf %85 : vector<32x8xf32> to vector<32x8xbf16>
    %87 = vector.extract_strided_slice %69 {offsets = [0, 8], sizes = [32, 17], strides = [1, 1]} : vector<32x25xf32> to vector<32x17xf32>
    %88 = arith.truncf %83 : vector<32x8xf32> to vector<32x8xbf16>
    %c1_41 = arith.constant 1 : index
    %c0_42 = arith.constant 0 : index
    %c0_43 = arith.constant 0 : index
    %89 = vector.load %arg6[%c1_41, %c0_42, %c0_43] : memref<3x8x1xbf16, #tpu.memory_space<vmem>>, vector<1x8x1xbf16>
    %90 = vector.shape_cast %89 : vector<1x8x1xbf16> to vector<8x1xbf16>
    %cst_44 = arith.constant dense<0.000000e+00> : vector<32x1xf32>
    %91 = tpu.matmul %88, %90, %cst_44 {dimension_numbers = #tpu.dot_dimension_numbers<[1], [0], [0], [1], [0, 0, 1, 1], [], []>} : vector<32x8xbf16>, vector<8x1xbf16>, vector<32x1xf32> -> vector<32x1xf32>
    %cst_45 = arith.constant dense<0xFF800000> : vector<1xf32>
    %92 = vector.multi_reduction <maximumf>, %91, %cst_45 [0] : vector<32x1xf32> to vector<1xf32>
    %93 = vector.shape_cast %92 : vector<1xf32> to vector<1x1xf32>
    %94 = vector.broadcast %93 : vector<1x1xf32> to vector<32x1xf32>
    %95 = arith.subf %91, %94 : vector<32x1xf32>
    %96 = math.exp %95 : vector<32x1xf32>
    %97 = vector.broadcast %96 : vector<32x1xf32> to vector<32x17xf32>
    %98 = arith.mulf %97, %87 : vector<32x17xf32>
    %99 = arith.truncf %98 : vector<32x17xf32> to vector<32x17xbf16>
    %cst_46 = arith.constant dense<0.000000e+00> : vector<17x128xf32>
    %100 = tpu.matmul %99, %1, %cst_46 {dimension_numbers = #tpu.dot_dimension_numbers<[0], [0], [1], [1], [0, 1, 1, 1], [], []>} : vector<32x17xbf16>, vector<32x128xbf16>, vector<17x128xf32> -> vector<17x128xf32>
    %101 = vector.extract_strided_slice %100 {offsets = [16, 0], sizes = [1, 128], strides = [1, 1]} : vector<17x128xf32> to vector<1x128xf32>
    %cst_47 = arith.constant 9.99999968E-21 : f32
    %102 = vector.broadcast %cst_47 : f32 to vector<1x128xf32>
    %103 = arith.maximumf %101, %102 : vector<1x128xf32>
    %104 = vector.extract_strided_slice %100 {offsets = [0, 0], sizes = [16, 128], strides = [1, 1]} : vector<17x128xf32> to vector<16x128xf32>
    %105 = tpu.reciprocal %103 {approx = true} : vector<1x128xf32> -> vector<1x128xf32>
    %106 = vector.broadcast %105 : vector<1x128xf32> to vector<16x128xf32>
    %107 = arith.mulf %104, %106 : vector<16x128xf32>
    %cst_48 = arith.constant 0.000000e+00 : f32
    %108 = vector.broadcast %cst_48 : f32 to vector<16x128xf32>
    %109 = arith.maximumf %107, %108 : vector<16x128xf32>
    %110 = arith.truncf %109 : vector<16x128xf32> to vector<16x128xbf16>
    %c2 = arith.constant 2 : index
    %c0_49 = arith.constant 0 : index
    %c0_50 = arith.constant 0 : index
    %111 = vector.load %arg4[%c2, %c0_49, %c0_50] : memref<3x16x50xbf16, #tpu.memory_space<vmem>>, vector<1x16x50xbf16>
    %112 = vector.shape_cast %111 : vector<1x16x50xbf16> to vector<16x50xbf16>
    %cst_51 = arith.constant dense<0.000000e+00> : vector<128x50xf32>
    %113 = tpu.matmul %110, %112, %cst_51 {dimension_numbers = #tpu.dot_dimension_numbers<[0], [0], [1], [1], [0, 1, 1, 1], [], []>} : vector<16x128xbf16>, vector<16x50xbf16>, vector<128x50xf32> -> vector<128x50xf32>
    %114 = vector.broadcast %8 : vector<1x50xf32> to vector<128x50xf32>
    %115 = arith.addf %113, %114 : vector<128x50xf32>
    %116 = vector.extract_strided_slice %115 {offsets = [0, 0], sizes = [128, 25], strides = [1, 1]} : vector<128x50xf32> to vector<128x25xf32>
    %117 = vector.extract_strided_slice %115 {offsets = [0, 25], sizes = [128, 25], strides = [1, 1]} : vector<128x50xf32> to vector<128x25xf32>
    %118 = tpu.concatenate %116, %117 in 0 : vector<128x25xf32>, vector<128x25xf32> -> vector<256x25xf32>
    %119 = arith.truncf %118 : vector<256x25xf32> to vector<256x25xbf16>
    %cst_52 = arith.constant dense<0.000000e+00> : vector<32x25xf32>
    %120 = tpu.matmul %0, %119, %cst_52 {dimension_numbers = #tpu.dot_dimension_numbers<[1], [0], [0], [1], [0, 0, 1, 1], [], []>} : vector<32x256xbf16>, vector<256x25xbf16>, vector<32x25xf32> -> vector<32x25xf32>
    %c2_53 = arith.constant 2 : index
    %c0_54 = arith.constant 0 : index
    %c0_55 = arith.constant 0 : index
    %121 = vector.load %arg5[%c2_53, %c0_54, %c0_55] : memref<3x8x8xbf16, #tpu.memory_space<vmem>>, vector<1x8x8xbf16>
    %122 = vector.shape_cast %121 : vector<1x8x8xbf16> to vector<8x8xbf16>
    %cst_56 = arith.constant dense<0.000000e+00> : vector<32x8xf32>
    %123 = tpu.matmul %86, %122, %cst_56 {dimension_numbers = #tpu.dot_dimension_numbers<[1], [0], [0], [1], [0, 0, 1, 1], [], []>} : vector<32x8xbf16>, vector<8x8xbf16>, vector<32x8xf32> -> vector<32x8xf32>
    %124 = vector.extract_strided_slice %120 {offsets = [0, 0], sizes = [32, 8], strides = [1, 1]} : vector<32x25xf32> to vector<32x8xf32>
    %125 = arith.addf %124, %123 : vector<32x8xf32>
    %c2_57 = arith.constant 2 : index
    %c0_58 = arith.constant 0 : index
    %c0_59 = arith.constant 0 : index
    %126 = vector.load %arg7[%c2_57, %c0_58, %c0_59] : memref<3x1x8xf32, #tpu.memory_space<vmem>>, vector<1x1x8xf32>
    %127 = vector.shape_cast %126 : vector<1x1x8xf32> to vector<1x8xf32>
    %128 = vector.broadcast %127 : vector<1x8xf32> to vector<32x8xf32>
    %129 = arith.addf %125, %128 : vector<32x8xf32>
    %cst_60 = arith.constant 0.000000e+00 : f32
    %130 = vector.broadcast %cst_60 : f32 to vector<32x8xf32>
    %131 = arith.cmpf ogt, %129, %130 : vector<32x8xf32>
    %cst_61 = arith.constant 0.00999999977 : f32
    %132 = vector.broadcast %cst_61 : f32 to vector<32x8xf32>
    %133 = arith.mulf %132, %129 : vector<32x8xf32>
    %134 = arith.select %131, %129, %133 : vector<32x8xi1>, vector<32x8xf32>
    %cst_62 = arith.constant 0.000000e+00 : f32
    %135 = vector.broadcast %cst_62 : f32 to vector<32x8xf32>
    %136 = arith.maximumf %134, %135 : vector<32x8xf32>
    %137 = arith.truncf %136 : vector<32x8xf32> to vector<32x8xbf16>
    %c0_63 = arith.constant 0 : index
    %c0_64 = arith.constant 0 : index
    %138 = vector.load %arg8[%c0_63, %c0_64] : memref<8x16xbf16, #tpu.memory_space<vmem>>, vector<8x16xbf16>
    %cst_65 = arith.constant dense<0.000000e+00> : vector<32x16xf32>
    %139 = tpu.matmul %137, %138, %cst_65 {dimension_numbers = #tpu.dot_dimension_numbers<[1], [0], [0], [1], [0, 0, 1, 1], [], []>} : vector<32x8xbf16>, vector<8x16xbf16>, vector<32x16xf32> -> vector<32x16xf32>
    %c0_66 = arith.constant 0 : index
    %c0_67 = arith.constant 0 : index
    %140 = vector.load %arg9[%c0_66, %c0_67] : memref<1x16xf32, #tpu.memory_space<vmem>>, vector<1x16xf32>
    %141 = vector.broadcast %140 : vector<1x16xf32> to vector<32x16xf32>
    %142 = arith.addf %139, %141 : vector<32x16xf32>
    %cst_68 = arith.constant 0.000000e+00 : f32
    %143 = vector.broadcast %cst_68 : f32 to vector<32x16xf32>
    %144 = arith.cmpf ogt, %142, %143 : vector<32x16xf32>
    %145 = math.exp %142 : vector<32x16xf32>
    %cst_69 = arith.constant 1.000000e+00 : f32
    %146 = vector.broadcast %cst_69 : f32 to vector<32x16xf32>
    %147 = arith.subf %145, %146 : vector<32x16xf32>
    %cst_70 = arith.constant 1.67326319 : f32
    %148 = vector.broadcast %cst_70 : f32 to vector<32x16xf32>
    %149 = arith.mulf %148, %147 : vector<32x16xf32>
    %150 = arith.select %144, %142, %149 : vector<32x16xi1>, vector<32x16xf32>
    %cst_71 = arith.constant 1.05070102 : f32
    %151 = vector.broadcast %cst_71 : f32 to vector<32x16xf32>
    %152 = arith.mulf %151, %150 : vector<32x16xf32>
    %153 = arith.truncf %152 : vector<32x16xf32> to vector<32x16xbf16>
    %c0_72 = arith.constant 0 : index
    %c0_73 = arith.constant 0 : index
    %154 = vector.load %arg10[%c0_72, %c0_73] : memref<16x1xbf16, #tpu.memory_space<vmem>>, vector<16x1xbf16>
    %cst_74 = arith.constant dense<0.000000e+00> : vector<32x1xf32>
    %155 = tpu.matmul %153, %154, %cst_74 {dimension_numbers = #tpu.dot_dimension_numbers<[1], [0], [0], [1], [0, 0, 1, 1], [], []>} : vector<32x16xbf16>, vector<16x1xbf16>, vector<32x1xf32> -> vector<32x1xf32>
    %c0_75 = arith.constant 0 : index
    %c0_76 = arith.constant 0 : index
    %156 = vector.load %arg11[%c0_75, %c0_76] : memref<1x1xf32, #tpu.memory_space<vmem>>, vector<1x1xf32>
    %157 = vector.broadcast %156 : vector<1x1xf32> to vector<32x1xf32>
    %158 = arith.addf %155, %157 : vector<32x1xf32>
    %159 = arith.truncf %158 : vector<32x1xf32> to vector<32x1xbf16>
    %cst_77 = arith.constant dense<0.000000e+00> : vector<1x256xf32>
    %160 = tpu.matmul %159, %0, %cst_77 {dimension_numbers = #tpu.dot_dimension_numbers<[0], [0], [1], [1], [0, 1, 1, 1], [], []>} : vector<32x1xbf16>, vector<32x256xbf16>, vector<1x256xf32> -> vector<1x256xf32>
    %161 = vector.extract_strided_slice %160 {offsets = [0, 128], sizes = [1, 128], strides = [1, 1]} : vector<1x256xf32> to vector<1x128xf32>
    %162 = vector.extract_strided_slice %160 {offsets = [0, 0], sizes = [1, 128], strides = [1, 1]} : vector<1x256xf32> to vector<1x128xf32>
    %163 = arith.subf %161, %162 : vector<1x128xf32>
    %c0_78 = arith.constant 0 : index
    %c0_79 = arith.constant 0 : index
    %164 = vector.load %arg3[%c0_78, %c0_79] : memref<1x128xf32, #tpu.memory_space<vmem>>, vector<1x128xf32>
    %165 = arith.addf %163, %164 : vector<1x128xf32>
    %c0_80 = arith.constant 0 : index
    %c0_81 = arith.constant 0 : index
    %166 = vector.load %arg12[%c0_80, %c0_81] : memref<1x128xf32, #tpu.memory_space<vmem>>, vector<1x128xf32>
    tpu.vector_store %arg12[%c0_80, %c0_81], %165 {strides = array<i32>} : memref<1x128xf32, #tpu.memory_space<vmem>>, vector<1x128xf32>,
    return
  }
}

</mosaic_0001>

<llo_original>
// kernel: tpu_custom_call.1
$region0: #{tpu_custom_call.1}
  #allocation0 [shape = 'u32[]', space=smem, size = 0x4, offset = 0x4, fixed_abs, tag = 'smem constant byte address 0x4 - core index']
  #allocation1 [shape = 'u32[72,128]{1,0:T(1,128)}', space=vmem, size = 0x9000, scoped, tag = 'internal scratch']
  #allocation2 [shape = 'f32[1,1]{1,0:T(1,128)S(1)}', space=vmem, size = 0x200, scoped, tag = 'scoped memory for tpu_custom_call.1']
  %s0 = inlined_call_operand.vmem [shape: bf16[32,256], index: 0, kind: input, shape index: {}]
  %s1 = inlined_call_operand.hbm [shape: bf16[16,128], index: 1, kind: input, shape index: {}]
  %s2 = inlined_call_operand.vmem [shape: bf16[32,8], index: 2, kind: input, shape index: {}]
  %s3 = inlined_call_operand.hbm [shape: f32[1,128], index: 3, kind: input, shape index: {}]
  %s4 = inlined_call_operand.hbm [shape: bf16[3,16,50], index: 4, kind: input, shape index: {}]
  %s5 = inlined_call_operand.vmem [shape: bf16[3,8,8], index: 5, kind: input, shape index: {}]
  %s6 = inlined_call_operand.vmem [shape: bf16[3,8,1], index: 6, kind: input, shape index: {}]
  %s7 = inlined_call_operand.vmem [shape: f32[3,1,8], index: 7, kind: input, shape index: {}]
  %s8 = inlined_call_operand.vmem [shape: bf16[8,16], index: 8, kind: input, shape index: {}]
  %s9 = inlined_call_operand.vmem [shape: f32[1,16], index: 9, kind: input, shape index: {}]
  %s10 = inlined_call_operand.vmem [shape: bf16[16,1], index: 10, kind: input, shape index: {}]
  %s11 = inlined_call_operand.<no memory space> [shape: f32[1,1], index: 11, kind: input, shape index: {}]
  %s12 = inlined_call_operand.hbm [shape: f32[1,128], index: 12, kind: output, shape index: {}]
  %s13 = sld [smem:[#allocation0]]
  $region70: #{tpu_custom_call.1} parent=0
    _
  %s15 = ssub.s32 1, %s13
  %s16 = scalar_select 0, %s15, %s13
  %v17 = vstv %s11
  %18 = vst [vmem:[#allocation2] sm:$0x1] %v17
  $region1: #{tpu_custom_call.1} parent=0
    #allocation3 [shape = 'u8[4096]{0}', space=vmem, size = 0x1000, scoped, tag = 'input window, operand 1, single buffered']
    #allocation4 [shape = 's32[1]{0}', space=sflag, size = 0x4, scoped, tag = 'scoped memory for tpu_custom_call.1']
    #allocation5 [shape = 's32[1]{0}', space=sflag, size = 0x4, scoped, tag = 'scoped memory for tpu_custom_call.1']
    #allocation6 [shape = 'u8[512]{0}', space=vmem, size = 0x400, scoped, tag = 'input window, operand 3, single buffered']
    #allocation7 [shape = 's32[1]{0}', space=sflag, size = 0x4, scoped, tag = 'scoped memory for tpu_custom_call.1']
    #allocation8 [shape = 'u8[12288]{0}', space=vmem, size = 0x3000, scoped, tag = 'input window, operand 4, single buffered']
    #allocation9 [shape = 'u8[512]{0}', space=vmem, size = 0x400, scoped, tag = 'output window, operand 0, single buffered']
    %19 = vsyncpa [#allocation4], 0
    %20 = vsyncpa [#allocation7], 0
    %21 = vsyncpa [#allocation5], 0
    // Predicated region
    $region2: #{tpu_custom_call.1} parent=1 // pred_check
      _
    $region3: #{tpu_custom_call.1} parent=1 // pred_check_branch
      %23 = sbr.rel (0) target = $region5
    $region4: #{tpu_custom_call.1} parent=1 // pred_region
      _
    $region5: #{tpu_custom_call.1} parent=1 // pred_fallthru
      _
    // Predicated region
    $region6: #{tpu_custom_call.1} parent=1 // pred_check
      _
    $region7: #{tpu_custom_call.1} parent=1 // pred_check_branch
      %25 = sbr.rel (0) target = $region9
    $region8: #{tpu_custom_call.1} parent=1 // pred_region
      %27 = vsyncadd [#allocation4], 0
      %s28 = sshll.u32 %s1, 4
      %s29 = int_to_ptr.hbm [resolvable:$true] %s28
      %s30 = sshll.u32 [#allocation3], 4
      %s31 = int_to_ptr.vmem [resolvable:$true] %s30
      %36 = dma.hbm_to_vmem [thread:$0]  %s29, 128, %s31, [#allocation4], 64, 64, 4
    $region9: #{tpu_custom_call.1} parent=1 // pred_fallthru
      _
    // Predicated region
    $region10: #{tpu_custom_call.1} parent=1 // pred_check
      _
    $region11: #{tpu_custom_call.1} parent=1 // pred_check_branch
      %38 = sbr.rel (0) target = $region13
    $region12: #{tpu_custom_call.1} parent=1 // pred_region
      _
    $region13: #{tpu_custom_call.1} parent=1 // pred_fallthru
      _
    // Predicated region
    $region14: #{tpu_custom_call.1} parent=1 // pred_check
      _
    $region15: #{tpu_custom_call.1} parent=1 // pred_check_branch
      %40 = sbr.rel (0) target = $region17
    $region16: #{tpu_custom_call.1} parent=1 // pred_region
      %42 = vsyncadd [#allocation7], 0
      %s44 = sshll.u32 %s3, 4
      %s45 = int_to_ptr.hbm [resolvable:$true] %s44
      %s46 = sshll.u32 [#allocation6], 4
      %s47 = int_to_ptr.vmem [resolvable:$true] %s46
      %49 = dma.hbm_to_vmem [thread:$0]  %s45, 16, %s47, [#allocation7]
    $region17: #{tpu_custom_call.1} parent=1 // pred_fallthru
      _
    // Predicated region
    $region18: #{tpu_custom_call.1} parent=1 // pred_check
      _
    $region19: #{tpu_custom_call.1} parent=1 // pred_check_branch
      %51 = sbr.rel (0) target = $region21
    $region20: #{tpu_custom_call.1} parent=1 // pred_region
      %53 = vsyncadd [#allocation7], 0
      %s54 = sshll.u32 %s4, 4
      %s55 = int_to_ptr.hbm [resolvable:$true] %s54
      %s56 = sshll.u32 [#allocation8], 4
      %s57 = int_to_ptr.vmem [resolvable:$true] %s56
      %62 = dma.hbm_to_vmem [thread:$0]  %s55, 384, %s57, [#allocation7], 64, 64, 4
    $region21: #{tpu_custom_call.1} parent=1 // pred_fallthru
      _
    // Predicated region
    $region22: #{tpu_custom_call.1} parent=1 // pred_check
      _
    $region23: #{tpu_custom_call.1} parent=1 // pred_check_branch
      %64 = sbr.rel (0) target = $region25
    $region24: #{tpu_custom_call.1} parent=1 // pred_region
      _
    $region25: #{tpu_custom_call.1} parent=1 // pred_fallthru
      _
    // Predicated region
    $region26: #{tpu_custom_call.1} parent=1 // pred_check
      _
    $region27: #{tpu_custom_call.1} parent=1 // pred_check_branch
      %66 = sbr.rel (0) target = $region29
    $region28: #{tpu_custom_call.1} parent=1 // pred_region
      _
    $region29: #{tpu_custom_call.1} parent=1 // pred_fallthru
      _
    // Predicated region
    $region30: #{tpu_custom_call.1} parent=1 // pred_check
      _
    $region31: #{tpu_custom_call.1} parent=1 // pred_check_branch
      %68 = sbr.rel (0) target = $region33
    $region32: #{tpu_custom_call.1} parent=1 // pred_region
      _
    $region33: #{tpu_custom_call.1} parent=1 // pred_fallthru
      _
    // Predicated region
    $region34: #{tpu_custom_call.1} parent=1 // pred_check
      _
    $region35: #{tpu_custom_call.1} parent=1 // pred_check_branch
      %70 = sbr.rel (0) target = $region37
    $region36: #{tpu_custom_call.1} parent=1 // pred_region
      _
    $region37: #{tpu_custom_call.1} parent=1 // pred_fallthru
      _
    // Predicated region
    $region38: #{tpu_custom_call.1} parent=1 // pred_check
      _
    $region39: #{tpu_custom_call.1} parent=1 // pred_check_branch
      %72 = sbr.rel (0) target = $region41
    $region40: #{tpu_custom_call.1} parent=1 // pred_region
      _
    $region41: #{tpu_custom_call.1} parent=1 // pred_fallthru
      _
    // Predicated region
    $region42: #{tpu_custom_call.1} parent=1 // pred_check
      _
    $region43: #{tpu_custom_call.1} parent=1 // pred_check_branch
      %74 = sbr.rel (0) target = $region45
    $region44: #{tpu_custom_call.1} parent=1 // pred_region
      _
    $region45: #{tpu_custom_call.1} parent=1 // pred_fallthru
      _
    // Predicated region
    $region46: #{tpu_custom_call.1} parent=1 // pred_check
      _
    $region47: #{tpu_custom_call.1} parent=1 // pred_check_branch
      %76 = sbr.rel (0) target = $region49
    $region48: #{tpu_custom_call.1} parent=1 // pred_region
      _
    $region49: #{tpu_custom_call.1} parent=1 // pred_fallthru
      _
    // Predicated region
    $region50: #{tpu_custom_call.1} parent=1 // pred_check
      _
    $region51: #{tpu_custom_call.1} parent=1 // pred_check_branch
      %78 = sbr.rel (0) target = $region53
    $region52: #{tpu_custom_call.1} parent=1 // pred_region
      %80 = dma.done [#allocation4], 128
    $region53: #{tpu_custom_call.1} parent=1 // pred_fallthru
      _
    // Predicated region
    $region54: #{tpu_custom_call.1} parent=1 // pred_check
      _
    $region55: #{tpu_custom_call.1} parent=1 // pred_check_branch
      %82 = sbr.rel (0) target = $region57
    $region56: #{tpu_custom_call.1} parent=1 // pred_region
      %84 = dma.done [#allocation7], 16
    $region57: #{tpu_custom_call.1} parent=1 // pred_fallthru
      _
    // Predicated region
    $region58: #{tpu_custom_call.1} parent=1 // pred_check
      _
    $region59: #{tpu_custom_call.1} parent=1 // pred_check_branch
      %86 = sbr.rel (0) target = $region61
    $region60: #{tpu_custom_call.1} parent=1 // pred_region
      %88 = dma.done [#allocation7], 384
    $region61: #{tpu_custom_call.1} parent=1 // pred_fallthru
      _
    %v90 = vld [vmem:[%s0] sm:$0xff]
    %v91 = vld [vmem:[%s0 + $0x8] sm:$0xff]
    %v92 = vld [vmem:[%s0 + $0x10] sm:$0xff]
    %v93 = vld [vmem:[%s0 + $0x18] sm:$0xff]
    %v94 = vld [vmem:[#allocation3] sm:$0xf]
    %v95 = vld [vmem:[#allocation3 + $0x4] sm:$0xf]
    %v96 = vld [vmem:[%s2] sm:$0xf]
    %v97 = vld [vmem:[%s2 + $0x4] sm:$0xf]
    %v98 = vld [vmem:[%s2 + $0x8] sm:$0xf]
    %v99 = vld [vmem:[%s2 + $0xc] sm:$0xf]
    %v100 = vlaneseq
    %v101 = vand.u32 %v100, 127
    %vm102 = vcmp.eq.s32.totalorder %v101, 24
    %v103 = vsel %vm102, 1, 0
    %v104 = vcvt.s32.f32 %v103
    %v105 = vld [vmem:[#allocation8] sm:$0xf]
    %v106 = vld [vmem:[#allocation8 + $0x4] sm:$0xf]
    %v109 = vunpack.c.l.b16 %v94
    %v110 = vunpack.c.l.b16 %v95
    %v111 = vpack.c.b16 %v110, %v109
    %113 = vxpose.xlu0.c.b16.start [1/8] %v111, 128
    %114 = vxpose.xlu0.c.b16.cont [2/8] 0, 128
    %115 = vxpose.xlu0.c.b16.cont [3/8] 0, 128
    %116 = vxpose.xlu0.c.b16.cont [4/8] 0, 128
    %117 = vxpose.xlu0.c.b16.cont [5/8] 0, 128
    %118 = vxpose.xlu0.c.b16.cont [6/8] 0, 128
    %119 = vxpose.xlu0.c.b16.cont [7/8] 0, 128
    %120 = vxpose.xlu0.c.b16.end [8/8] 0, 128
    %v121 = vpop.trf.xlu0
    %v122 = vpop.trf.xlu0
    %v123 = vpop.trf.xlu0
    %v124 = vpop.trf.xlu0
    %v125 = vpop.trf.xlu0
    %v126 = vpop.trf.xlu0
    %v127 = vpop.trf.xlu0
    %v128 = vpop.trf.xlu0
    %v131 = vunpack.c.l.b16 %v105
    %v132 = vunpack.c.l.b16 %v106
    %v133 = vpack.c.b16 %v132, %v131
    %vm135 = vcmask 130048
    %v137 = vsel %vm135, %v121, 0
    %v140 = vsel %vm135, %v122, 0
    %v143 = vsel %vm135, %v123, 0
    %v146 = vsel %vm135, %v124, 0
    %v149 = vsel %vm135, %v125, 0
    %v152 = vsel %vm135, %v126, 0
    %v155 = vsel %vm135, %v127, 0
    %v158 = vsel %vm135, %v128, 0
    %160 = vmatpush.bf16.msra.mxu0 0
    %161 = vmatpush.bf16.msra.mxu0 0
    %162 = vmatpush.bf16.msra.mxu0 0
    %163 = vmatpush.bf16.msra.mxu0 0
    %164 = vmatpush.bf16.msra.mxu0 0
    %165 = vmatpush.bf16.msra.mxu0 0
    %166 = vmatpush.bf16.msra.mxu0 0
    %167 = vmatpush.bf16.msra.mxu0 %v133
    %168 = vmatmul.bf16.gmra.mxu0 %v137
    %v169 = vpop.f32.mrf.mxu0
    %v170 = vadd.f32 %v104, %v169
    %v171 = vpop.f32.mrf.mxu0
    %v172 = vadd.f32 %v104, %v171
    %173 = vmatmul.bf16.gmra.mxu0 %v140
    %v174 = vpop.f32.mrf.mxu0
    %v175 = vadd.f32 %v104, %v174
    %v176 = vpop.f32.mrf.mxu0
    %v177 = vadd.f32 %v104, %v176
    %178 = vmatmul.bf16.gmra.mxu0 %v143
    %v179 = vpop.f32.mrf.mxu0
    %v180 = vadd.f32 %v104, %v179
    %v181 = vpop.f32.mrf.mxu0
    %v182 = vadd.f32 %v104, %v181
    %183 = vmatmul.bf16.gmra.mxu0 %v146
    %v184 = vpop.f32.mrf.mxu0
    %v185 = vadd.f32 %v104, %v184
    %v186 = vpop.f32.mrf.mxu0
    %v187 = vadd.f32 %v104, %v186
    %188 = vmatmul.bf16.gmra.mxu0 %v149
    %v189 = vpop.f32.mrf.mxu0
    %v190 = vadd.f32 %v104, %v189
    %v191 = vpop.f32.mrf.mxu0
    %v192 = vadd.f32 %v104, %v191
    %193 = vmatmul.bf16.gmra.mxu0 %v152
    %v194 = vpop.f32.mrf.mxu0
    %v195 = vadd.f32 %v104, %v194
    %v196 = vpop.f32.mrf.mxu0
    %v197 = vadd.f32 %v104, %v196
    %198 = vmatmul.bf16.gmra.mxu0 %v155
    %v199 = vpop.f32.mrf.mxu0
    %v200 = vadd.f32 %v104, %v199
    %v201 = vpop.f32.mrf.mxu0
    %v202 = vadd.f32 %v104, %v201
    %203 = vmatmul.bf16.gmra.mxu0 %v158
    %v204 = vpop.f32.mrf.mxu0
    %v205 = vadd.f32 %v104, %v204
    %v206 = vpop.f32.mrf.mxu0
    %v207 = vadd.f32 %v104, %v206
    %208 = vdwg.mxu0
    %225 = vrot.lane.b32.xlu0 %v170, 103
    %v226 = vpop.permute.xlu0 %225
    %227 = vrot.lane.b32.xlu0 %v172, 103
    %v228 = vpop.permute.xlu0 %227
    %229 = vrot.lane.b32.xlu0 %v175, 103
    %v230 = vpop.permute.xlu0 %229
    %231 = vrot.lane.b32.xlu0 %v177, 103
    %v232 = vpop.permute.xlu0 %231
    %233 = vrot.lane.b32.xlu0 %v180, 103
    %v234 = vpop.permute.xlu0 %233
    %235 = vrot.lane.b32.xlu0 %v182, 103
    %v236 = vpop.permute.xlu0 %235
    %237 = vrot.lane.b32.xlu0 %v185, 103
    %v238 = vpop.permute.xlu0 %237
    %239 = vrot.lane.b32.xlu0 %v187, 103
    %v240 = vpop.permute.xlu0 %239
    %241 = vrot.lane.b32.xlu0 %v190, 103
    %v242 = vpop.permute.xlu0 %241
    %243 = vrot.lane.b32.xlu0 %v192, 103
    %v244 = vpop.permute.xlu0 %243
    %245 = vrot.lane.b32.xlu0 %v195, 103
    %v246 = vpop.permute.xlu0 %245
    %247 = vrot.lane.b32.xlu0 %v197, 103
    %v248 = vpop.permute.xlu0 %247
    %249 = vrot.lane.b32.xlu0 %v200, 103
    %v250 = vpop.permute.xlu0 %249
    %251 = vrot.lane.b32.xlu0 %v202, 103
    %v252 = vpop.permute.xlu0 %251
    %253 = vrot.lane.b32.xlu0 %v205, 103
    %v254 = vpop.permute.xlu0 %253
    %255 = vrot.lane.b32.xlu0 %v207, 103
    %v256 = vpop.permute.xlu0 %255
    %v273 = vpack.c.bf16 %v172, %v170
    %v274 = vpack.c.bf16 %v177, %v175
    %v275 = vpack.c.bf16 %v182, %v180
    %v276 = vpack.c.bf16 %v187, %v185
    %v277 = vpack.c.bf16 %v192, %v190
    %v278 = vpack.c.bf16 %v197, %v195
    %v279 = vpack.c.bf16 %v202, %v200
    %v280 = vpack.c.bf16 %v207, %v205
    %v281 = vpack.c.bf16 %v228, %v226
    %v282 = vpack.c.bf16 %v232, %v230
    %v283 = vpack.c.bf16 %v236, %v234
    %v284 = vpack.c.bf16 %v240, %v238
    %v285 = vpack.c.bf16 %v244, %v242
    %v286 = vpack.c.bf16 %v248, %v246
    %v287 = vpack.c.bf16 %v252, %v250
    %v288 = vpack.c.bf16 %v256, %v254
    %v293 = vunpack.c.l.b16 %v90
    %v294 = vunpack.c.h.b16 %v90
    %v295 = vunpack.c.l.b16 %v91
    %v296 = vunpack.c.h.b16 %v91
    %v297 = vunpack.c.l.b16 %v92
    %v298 = vunpack.c.h.b16 %v92
    %v299 = vunpack.c.l.b16 %v93
    %v300 = vunpack.c.h.b16 %v93
    %v301 = vpack.c.b16 %v295, %v293
    %v302 = vpack.c.b16 %v296, %v294
    %v303 = vpack.c.b16 %v299, %v297
    %v304 = vpack.c.b16 %v300, %v298
    %309 = vmatpush.bf16.msra.mxu0 %v280
    %310 = vmatpush.bf16.msra.mxu0 %v279
    %311 = vmatpush.bf16.msra.mxu0 %v278
    %312 = vmatpush.bf16.msra.mxu0 %v277
    %313 = vmatpush.bf16.msra.mxu0 %v276
    %314 = vmatpush.bf16.msra.mxu0 %v275
    %315 = vmatpush.bf16.msra.mxu0 %v274
    %316 = vmatpush.bf16.msra.mxu0 %v273
    %317 = vmatmul.bf16.gmra.mxu0 %v301
    %v318 = vpop.f32.mrf.mxu0
    %v319 = vadd.f32 0.0, %v318
    %v320 = vpop.f32.mrf.mxu0
    %v321 = vadd.f32 0.0, %v320
    %322 = vmatmul.bf16.gmra.mxu0 %v303
    %v323 = vpop.f32.mrf.mxu0
    %v324 = vadd.f32 0.0, %v323
    %v325 = vpop.f32.mrf.mxu0
    %v326 = vadd.f32 0.0, %v325
    %327 = vdwg.mxu0
    %328 = vmatpush.bf16.msra.mxu0 %v288
    %329 = vmatpush.bf16.msra.mxu0 %v287
    %330 = vmatpush.bf16.msra.mxu0 %v286
    %331 = vmatpush.bf16.msra.mxu0 %v285
    %332 = vmatpush.bf16.msra.mxu0 %v284
    %333 = vmatpush.bf16.msra.mxu0 %v283
    %334 = vmatpush.bf16.msra.mxu0 %v282
    %335 = vmatpush.bf16.msra.mxu0 %v281
    %336 = vmatmul.bf16.gmra.mxu0 %v302
    %v337 = vpop.f32.mrf.mxu0
    %v338 = vadd.f32 %v319, %v337
    %v339 = vpop.f32.mrf.mxu0
    %v340 = vadd.f32 %v321, %v339
    %341 = vmatmul.bf16.gmra.mxu0 %v304
    %v342 = vpop.f32.mrf.mxu0
    %v343 = vadd.f32 %v324, %v342
    %v344 = vpop.f32.mrf.mxu0
    %v345 = vadd.f32 %v326, %v344
    %346 = vdwg.mxu0
    %v347 = vld [vmem:[%s5] sm:$0xf]
    %v352 = vunpack.c.l.b16 %v96
    %v353 = vunpack.c.l.b16 %v97
    %v354 = vunpack.c.l.b16 %v98
    %v355 = vunpack.c.l.b16 %v99
    %v356 = vpack.c.b16 %v353, %v352
    %v357 = vpack.c.b16 %v355, %v354
    %vm358 = vcmask 64512
    %v360 = vsel %vm358, %v356, 0
    %v363 = vsel %vm358, %v357, 0
    %vm365 = vcmask 1043456
    %v367 = vsel %vm365, %v347, 0
    %369 = vmatpush.bf16.msra.mxu0 0
    %370 = vmatpush.bf16.msra.mxu0 0
    %371 = vmatpush.bf16.msra.mxu0 0
    %372 = vmatpush.bf16.msra.mxu0 0
    %373 = vmatpush.bf16.msra.mxu0 0
    %374 = vmatpush.bf16.msra.mxu0 0
    %375 = vmatpush.bf16.msra.mxu0 0
    %376 = vmatpush.bf16.msra.mxu0 %v367
    %377 = vmatmul.bf16.gmra.mxu0 %v360
    %v378 = vpop.f32.mrf.mxu0
    %v379 = vadd.f32 0.0, %v378
    %v380 = vpop.f32.mrf.mxu0
    %v381 = vadd.f32 0.0, %v380
    %382 = vmatmul.bf16.gmra.mxu0 %v363
    %v383 = vpop.f32.mrf.mxu0
    %v384 = vadd.f32 0.0, %v383
    %v385 = vpop.f32.mrf.mxu0
    %v386 = vadd.f32 0.0, %v385
    %387 = vdwg.mxu0
    %v388 = vadd.f32 %v338, %v379
    %v389 = vadd.f32 %v340, %v381
    %v390 = vadd.f32 %v343, %v384
    %v391 = vadd.f32 %v345, %v386
    %v392 = vld [vmem:[%s7] sm:$0x1]
    %v394 = vperm.slane %v392, 0
    %v396 = vadd.f32 %v388, %v394
    %v397 = vadd.f32 %v389, %v394
    %v398 = vadd.f32 %v390, %v394
    %v399 = vadd.f32 %v391, %v394
    %vm400 = vcmp.gt.f32.partialorder %v396, 0.0
    %vm401 = vcmp.gt.f32.partialorder %v397, 0.0
    %vm402 = vcmp.gt.f32.partialorder %v398, 0.0
    %vm403 = vcmp.gt.f32.partialorder %v399, 0.0
    %v404 = vmul.f32 %v396, 0.01
    %v405 = vmul.f32 %v397, 0.01
    %v406 = vmul.f32 %v398, 0.01
    %v407 = vmul.f32 %v399, 0.01
    %v408 = vsel %vm400, %v396, %v404
    %v409 = vsel %vm401, %v397, %v405
    %v410 = vsel %vm402, %v398, %v406
    %v411 = vsel %vm403, %v399, %v407
    %v412 = vmax.f32 %v408, 0.0
    %v413 = vmax.f32 %v409, 0.0
    %v414 = vmax.f32 %v410, 0.0
    %v415 = vmax.f32 %v411, 0.0
    %v416 = vpack.c.bf16 %v413, %v412
    %v417 = vpack.c.bf16 %v415, %v414
    %v418 = vpack.c.bf16 %v409, %v408
    %v419 = vpack.c.bf16 %v411, %v410
    %v420 = vld [vmem:[%s6] sm:$0xf]
    %v422 = vsel %vm358, %v418, 0
    %v425 = vsel %vm358, %v419, 0
    %v428 = vsel %vm365, %v420, 0
    %430 = vmatpush.bf16.msra.mxu0 0
    %431 = vmatpush.bf16.msra.mxu0 0
    %432 = vmatpush.bf16.msra.mxu0 0
    %433 = vmatpush.bf16.msra.mxu0 0
    %434 = vmatpush.bf16.msra.mxu0 0
    %435 = vmatpush.bf16.msra.mxu0 0
    %436 = vmatpush.bf16.msra.mxu0 0
    %437 = vmatpush.bf16.msra.mxu0 %v428
    %438 = vmatmul.bf16.gmra.mxu0 %v422
    %v439 = vpop.f32.mrf.mxu0
    %v440 = vadd.f32 0.0, %v439
    %v441 = vpop.f32.mrf.mxu0
    %v442 = vadd.f32 0.0, %v441
    %443 = vmatmul.bf16.gmra.mxu0 %v425
    %v444 = vpop.f32.mrf.mxu0
    %v445 = vadd.f32 0.0, %v444
    %v446 = vpop.f32.mrf.mxu0
    %v447 = vadd.f32 0.0, %v446
    %448 = vdwg.mxu0
    %vm449 = vcmask 7168
    %v450 = vsel %vm449, %v440, -inf
    %v451 = vsel %vm449, %v442, -inf
    %v452 = vsel %vm449, %v445, -inf
    %v453 = vsel %vm449, %v447, -inf
    %v454 = vmax.f32 %v450, %v451
    %v455 = vmax.f32 %v452, %v453
    %v456 = vmax.f32 %v454, %v455
    %v457 = vrot.slane %v456, 4
    %v458 = vmax.f32 %v456, %v457
    %v459 = vrot.slane %v458, 2
    %v460 = vmax.f32 %v458, %v459
    %v461 = vrot.slane %v460, 1
    %v462 = vmax.f32 %v460, %v461
    %v463 = vsub.f32 %v440, %v462
    %v464 = vsub.f32 %v442, %v462
    %v465 = vsub.f32 %v445, %v462
    %v466 = vsub.f32 %v447, %v462
    %v467 = vmul.f32 %v463, 1.442695
    %v468 = vpow.pop %v467
    %v469 = vmul.f32 %v464, 1.442695
    %v470 = vpow.pop %v469
    %v471 = vmul.f32 %v465, 1.442695
    %v472 = vpow.pop %v471
    %v473 = vmul.f32 %v466, 1.442695
    %v474 = vpow.pop %v473
    %476 = vset.pattern.permute.xlu0 0
    %477 = vperm.xlu0 %476, %v468
    %v478 = vpop.permute.xlu0 %477
    %481 = vset.pattern.permute.xlu0 0
    %482 = vperm.xlu0 %481, %v470
    %v483 = vpop.permute.xlu0 %482
    %486 = vset.pattern.permute.xlu0 0
    %487 = vperm.xlu0 %486, %v472
    %v488 = vpop.permute.xlu0 %487
    %491 = vset.pattern.permute.xlu0 0
    %492 = vperm.xlu0 %491, %v474
    %v493 = vpop.permute.xlu0 %492
    %v495 = vmul.f32 %v478, %v338
    %v496 = vmul.f32 %v483, %v340
    %v497 = vmul.f32 %v488, %v343
    %v498 = vmul.f32 %v493, %v345
    %v499 = vpack.c.bf16 %v496, %v495
    %v500 = vpack.c.bf16 %v498, %v497
    %503 = vrot.lane.b32.xlu0 %v499, 120
    %v504 = vpop.permute.xlu0 %503
    %505 = vrot.lane.b32.xlu0 %v500, 120
    %v506 = vpop.permute.xlu0 %505
    %509 = vxpose.xlu0.c.b16.start [1/8] %v504, 128
    %510 = vxpose.xlu0.c.b16.cont [2/8] %v506, 128
    %511 = vxpose.xlu0.c.b16.cont [3/8] 0, 128
    %512 = vxpose.xlu0.c.b16.cont [4/8] 0, 128
    %513 = vxpose.xlu0.c.b16.cont [5/8] 0, 128
    %514 = vxpose.xlu0.c.b16.cont [6/8] 0, 128
    %515 = vxpose.xlu0.c.b16.cont [7/8] 0, 128
    %516 = vxpose.xlu0.c.b16.end [8/8] 0, 128
    %v517 = vpop.trf.xlu0
    %v518 = vpop.trf.xlu0
    %v519 = vpop.trf.xlu0
    %v520 = vpop.trf.xlu0
    %v521 = vpop.trf.xlu0
    %v522 = vpop.trf.xlu0
    %v523 = vpop.trf.xlu0
    %v524 = vpop.trf.xlu0
    %vm525 = vcmask 261120
    %v527 = vsel %vm525, %v517, 0
    %v530 = vsel %vm525, %v518, 0
    %532 = vmatpush.bf16.msra.mxu0 0
    %533 = vmatpush.bf16.msra.mxu0 0
    %534 = vmatpush.bf16.msra.mxu0 0
    %535 = vmatpush.bf16.msra.mxu0 0
    %536 = vmatpush.bf16.msra.mxu0 0
    %537 = vmatpush.bf16.msra.mxu0 0
    %538 = vmatpush.bf16.msra.mxu0 %v304
    %539 = vmatpush.bf16.msra.mxu0 %v302
    %540 = vmatmul.bf16.gmra.mxu0 %v527
    %v541 = vpop.f32.mrf.mxu0
    %v542 = vadd.f32 0.0, %v541
    %v543 = vpop.f32.mrf.mxu0
    %v544 = vadd.f32 0.0, %v543
    %545 = vmatmul.bf16.gmra.mxu0 %v530
    %v546 = vpop.f32.mrf.mxu0
    %v547 = vadd.f32 0.0, %v546
    %v548 = vpop.f32.mrf.mxu0
    %549 = vdwg.mxu0
    %v550 = vmax.f32 %v547, 1e-20
    %v551 = vrcp.pop %v550
    %v552 = vperm.slane %v551, 0
    %v553 = vmul.f32 %v542, %v552
    %v554 = vmul.f32 %v544, %v552
    %v555 = vmax.f32 %v553, 0.0
    %v556 = vmax.f32 %v554, 0.0
    %v557 = vpack.c.bf16 %v556, %v555
    %s558 = scalar_lea.vmem [#allocation8], 8
    %v559 = vld [vmem:[%s558] sm:$0xf]
    %v560 = vld [vmem:[%s558 + $0x4] sm:$0xf]
    %561 = vxpose.xlu0.c.b16.start [1/8] %v557, 128
    %562 = vxpose.xlu0.c.b16.cont [2/8] 0, 128
    %563 = vxpose.xlu0.c.b16.cont [3/8] 0, 128
    %564 = vxpose.xlu0.c.b16.cont [4/8] 0, 128
    %565 = vxpose.xlu0.c.b16.cont [5/8] 0, 128
    %566 = vxpose.xlu0.c.b16.cont [6/8] 0, 128
    %567 = vxpose.xlu0.c.b16.cont [7/8] 0, 128
    %568 = vxpose.xlu0.c.b16.end [8/8] 0, 128
    %v569 = vpop.trf.xlu0
    %v570 = vpop.trf.xlu0
    %v571 = vpop.trf.xlu0
    %v572 = vpop.trf.xlu0
    %v573 = vpop.trf.xlu0
    %v574 = vpop.trf.xlu0
    %v575 = vpop.trf.xlu0
    %v576 = vpop.trf.xlu0
    %v579 = vunpack.c.l.b16 %v559
    %v580 = vunpack.c.l.b16 %v560
    %v581 = vpack.c.b16 %v580, %v579
    %v584 = vsel %vm135, %v569, 0
    %v587 = vsel %vm135, %v570, 0
    %v590 = vsel %vm135, %v571, 0
    %v593 = vsel %vm135, %v572, 0
    %v596 = vsel %vm135, %v573, 0
    %v599 = vsel %vm135, %v574, 0
    %v602 = vsel %vm135, %v575, 0
    %v605 = vsel %vm135, %v576, 0
    %607 = vmatpush.bf16.msra.mxu0 0
    %608 = vmatpush.bf16.msra.mxu0 0
    %609 = vmatpush.bf16.msra.mxu0 0
    %610 = vmatpush.bf16.msra.mxu0 0
    %611 = vmatpush.bf16.msra.mxu0 0
    %612 = vmatpush.bf16.msra.mxu0 0
    %613 = vmatpush.bf16.msra.mxu0 0
    %614 = vmatpush.bf16.msra.mxu0 %v581
    %615 = vmatmul.bf16.gmra.mxu0 %v584
    %v616 = vpop.f32.mrf.mxu0
    %v617 = vadd.f32 %v104, %v616
    %v618 = vpop.f32.mrf.mxu0
    %v619 = vadd.f32 %v104, %v618
    %620 = vmatmul.bf16.gmra.mxu0 %v587
    %v621 = vpop.f32.mrf.mxu0
    %v622 = vadd.f32 %v104, %v621
    %v623 = vpop.f32.mrf.mxu0
    %v624 = vadd.f32 %v104, %v623
    %625 = vmatmul.bf16.gmra.mxu0 %v590
    %v626 = vpop.f32.mrf.mxu0
    %v627 = vadd.f32 %v104, %v626
    %v628 = vpop.f32.mrf.mxu0
    %v629 = vadd.f32 %v104, %v628
    %630 = vmatmul.bf16.gmra.mxu0 %v593
    %v631 = vpop.f32.mrf.mxu0
    %v632 = vadd.f32 %v104, %v631
    %v633 = vpop.f32.mrf.mxu0
    %v634 = vadd.f32 %v104, %v633
    %635 = vmatmul.bf16.gmra.mxu0 %v596
    %v636 = vpop.f32.mrf.mxu0
    %v637 = vadd.f32 %v104, %v636
    %v638 = vpop.f32.mrf.mxu0
    %v639 = vadd.f32 %v104, %v638
    %640 = vmatmul.bf16.gmra.mxu0 %v599
    %v641 = vpop.f32.mrf.mxu0
    %v642 = vadd.f32 %v104, %v641
    %v643 = vpop.f32.mrf.mxu0
    %v644 = vadd.f32 %v104, %v643
    %645 = vmatmul.bf16.gmra.mxu0 %v602
    %v646 = vpop.f32.mrf.mxu0
    %v647 = vadd.f32 %v104, %v646
    %v648 = vpop.f32.mrf.mxu0
    %v649 = vadd.f32 %v104, %v648
    %650 = vmatmul.bf16.gmra.mxu0 %v605
    %v651 = vpop.f32.mrf.mxu0
    %v652 = vadd.f32 %v104, %v651
    %v653 = vpop.f32.mrf.mxu0
    %v654 = vadd.f32 %v104, %v653
    %655 = vdwg.mxu0
    %672 = vrot.lane.b32.xlu0 %v617, 103
    %v673 = vpop.permute.xlu0 %672
    %674 = vrot.lane.b32.xlu0 %v619, 103
    %v675 = vpop.permute.xlu0 %674
    %676 = vrot.lane.b32.xlu0 %v622, 103
    %v677 = vpop.permute.xlu0 %676
    %678 = vrot.lane.b32.xlu0 %v624, 103
    %v679 = vpop.permute.xlu0 %678
    %680 = vrot.lane.b32.xlu0 %v627, 103
    %v681 = vpop.permute.xlu0 %680
    %682 = vrot.lane.b32.xlu0 %v629, 103
    %v683 = vpop.permute.xlu0 %682
    %684 = vrot.lane.b32.xlu0 %v632, 103
    %v685 = vpop.permute.xlu0 %684
    %686 = vrot.lane.b32.xlu0 %v634, 103
    %v687 = vpop.permute.xlu0 %686
    %688 = vrot.lane.b32.xlu0 %v637, 103
    %v689 = vpop.permute.xlu0 %688
    %690 = vrot.lane.b32.xlu0 %v639, 103
    %v691 = vpop.permute.xlu0 %690
    %692 = vrot.lane.b32.xlu0 %v642, 103
    %v693 = vpop.permute.xlu0 %692
    %694 = vrot.lane.b32.xlu0 %v644, 103
    %v695 = vpop.permute.xlu0 %694
    %696 = vrot.lane.b32.xlu0 %v647, 103
    %v697 = vpop.permute.xlu0 %696
    %698 = vrot.lane.b32.xlu0 %v649, 103
    %v699 = vpop.permute.xlu0 %698
    %700 = vrot.lane.b32.xlu0 %v652, 103
    %v701 = vpop.permute.xlu0 %700
    %702 = vrot.lane.b32.xlu0 %v654, 103
    %v703 = vpop.permute.xlu0 %702
    %v720 = vpack.c.bf16 %v619, %v617
    %v721 = vpack.c.bf16 %v624, %v622
    %v722 = vpack.c.bf16 %v629, %v627
    %v723 = vpack.c.bf16 %v634, %v632
    %v724 = vpack.c.bf16 %v639, %v637
    %v725 = vpack.c.bf16 %v644, %v642
    %v726 = vpack.c.bf16 %v649, %v647
    %v727 = vpack.c.bf16 %v654, %v652
    %v728 = vpack.c.bf16 %v675, %v673
    %v729 = vpack.c.bf16 %v679, %v677
    %v730 = vpack.c.bf16 %v683, %v681
    %v731 = vpack.c.bf16 %v687, %v685
    %v732 = vpack.c.bf16 %v691, %v689
    %v733 = vpack.c.bf16 %v695, %v693
    %v734 = vpack.c.bf16 %v699, %v697
    %v735 = vpack.c.bf16 %v703, %v701
    %736 = vmatpush.bf16.msra.mxu0 %v727
    %737 = vmatpush.bf16.msra.mxu0 %v726
    %738 = vmatpush.bf16.msra.mxu0 %v725
    %739 = vmatpush.bf16.msra.mxu0 %v724
    %740 = vmatpush.bf16.msra.mxu0 %v723
    %741 = vmatpush.bf16.msra.mxu0 %v722
    %742 = vmatpush.bf16.msra.mxu0 %v721
    %743 = vmatpush.bf16.msra.mxu0 %v720
    %744 = vmatmul.bf16.gmra.mxu0 %v301
    %v745 = vpop.f32.mrf.mxu0
    %v746 = vadd.f32 0.0, %v745
    %v747 = vpop.f32.mrf.mxu0
    %v748 = vadd.f32 0.0, %v747
    %749 = vmatmul.bf16.gmra.mxu0 %v303
    %v750 = vpop.f32.mrf.mxu0
    %v751 = vadd.f32 0.0, %v750
    %v752 = vpop.f32.mrf.mxu0
    %v753 = vadd.f32 0.0, %v752
    %754 = vdwg.mxu0
    %755 = vmatpush.bf16.msra.mxu0 %v735
    %756 = vmatpush.bf16.msra.mxu0 %v734
    %757 = vmatpush.bf16.msra.mxu0 %v733
    %758 = vmatpush.bf16.msra.mxu0 %v732
    %759 = vmatpush.bf16.msra.mxu0 %v731
    %760 = vmatpush.bf16.msra.mxu0 %v730
    %761 = vmatpush.bf16.msra.mxu0 %v729
    %762 = vmatpush.bf16.msra.mxu0 %v728
    %763 = vmatmul.bf16.gmra.mxu0 %v302
    %v764 = vpop.f32.mrf.mxu0
    %v765 = vadd.f32 %v746, %v764
    %v766 = vpop.f32.mrf.mxu0
    %v767 = vadd.f32 %v748, %v766
    %768 = vmatmul.bf16.gmra.mxu0 %v304
    %v769 = vpop.f32.mrf.mxu0
    %v770 = vadd.f32 %v751, %v769
    %v771 = vpop.f32.mrf.mxu0
    %v772 = vadd.f32 %v753, %v771
    %773 = vdwg.mxu0
    %s774 = scalar_lea.vmem %s5, 4
    %v775 = vld [vmem:[%s774] sm:$0xf]
    %v777 = vsel %vm358, %v416, 0
    %v780 = vsel %vm358, %v417, 0
    %v783 = vsel %vm365, %v775, 0
    %785 = vmatpush.bf16.msra.mxu0 0
    %786 = vmatpush.bf16.msra.mxu0 0
    %787 = vmatpush.bf16.msra.mxu0 0
    %788 = vmatpush.bf16.msra.mxu0 0
    %789 = vmatpush.bf16.msra.mxu0 0
    %790 = vmatpush.bf16.msra.mxu0 0
    %791 = vmatpush.bf16.msra.mxu0 0
    %792 = vmatpush.bf16.msra.mxu0 %v783
    %793 = vmatmul.bf16.gmra.mxu0 %v777
    %v794 = vpop.f32.mrf.mxu0
    %v795 = vadd.f32 0.0, %v794
    %v796 = vpop.f32.mrf.mxu0
    %v797 = vadd.f32 0.0, %v796
    %798 = vmatmul.bf16.gmra.mxu0 %v780
    %v799 = vpop.f32.mrf.mxu0
    %v800 = vadd.f32 0.0, %v799
    %v801 = vpop.f32.mrf.mxu0
    %v802 = vadd.f32 0.0, %v801
    %803 = vdwg.mxu0
    %v804 = vadd.f32 %v765, %v795
    %v805 = vadd.f32 %v767, %v797
    %v806 = vadd.f32 %v770, %v800
    %v807 = vadd.f32 %v772, %v802
    %s808 = scalar_lea.vmem %s7, 1
    %v809 = vld [vmem:[%s808] sm:$0x1]
    %v811 = vperm.slane %v809, 0
    %v813 = vadd.f32 %v804, %v811
    %v814 = vadd.f32 %v805, %v811
    %v815 = vadd.f32 %v806, %v811
    %v816 = vadd.f32 %v807, %v811
    %vm817 = vcmp.gt.f32.partialorder %v813, 0.0
    %vm818 = vcmp.gt.f32.partialorder %v814, 0.0
    %vm819 = vcmp.gt.f32.partialorder %v815, 0.0
    %vm820 = vcmp.gt.f32.partialorder %v816, 0.0
    %v821 = vmul.f32 %v813, 0.01
    %v822 = vmul.f32 %v814, 0.01
    %v823 = vmul.f32 %v815, 0.01
    %v824 = vmul.f32 %v816, 0.01
    %v825 = vsel %vm817, %v813, %v821
    %v826 = vsel %vm818, %v814, %v822
    %v827 = vsel %vm819, %v815, %v823
    %v828 = vsel %vm820, %v816, %v824
    %v829 = vmax.f32 %v825, 0.0
    %v830 = vmax.f32 %v826, 0.0
    %v831 = vmax.f32 %v827, 0.0
    %v832 = vmax.f32 %v828, 0.0
    %v833 = vpack.c.bf16 %v830, %v829
    %v834 = vpack.c.bf16 %v832, %v831
    %v835 = vpack.c.bf16 %v826, %v825
    %v836 = vpack.c.bf16 %v828, %v827
    %s837 = scalar_lea.vmem %s6, 4
    %v838 = vld [vmem:[%s837] sm:$0xf]
    %v840 = vsel %vm358, %v835, 0
    %v843 = vsel %vm358, %v836, 0
    %v846 = vsel %vm365, %v838, 0
    %848 = vmatpush.bf16.msra.mxu0 0
    %849 = vmatpush.bf16.msra.mxu0 0
    %850 = vmatpush.bf16.msra.mxu0 0
    %851 = vmatpush.bf16.msra.mxu0 0
    %852 = vmatpush.bf16.msra.mxu0 0
    %853 = vmatpush.bf16.msra.mxu0 0
    %854 = vmatpush.bf16.msra.mxu0 0
    %855 = vmatpush.bf16.msra.mxu0 %v846
    %856 = vmatmul.bf16.gmra.mxu0 %v840
    %v857 = vpop.f32.mrf.mxu0
    %v858 = vadd.f32 0.0, %v857
    %v859 = vpop.f32.mrf.mxu0
    %v860 = vadd.f32 0.0, %v859
    %861 = vmatmul.bf16.gmra.mxu0 %v843
    %v862 = vpop.f32.mrf.mxu0
    %v863 = vadd.f32 0.0, %v862
    %v864 = vpop.f32.mrf.mxu0
    %v865 = vadd.f32 0.0, %v864
    %866 = vdwg.mxu0
    %v867 = vsel %vm449, %v858, -inf
    %v868 = vsel %vm449, %v860, -inf
    %v869 = vsel %vm449, %v863, -inf
    %v870 = vsel %vm449, %v865, -inf
    %v871 = vmax.f32 %v867, %v868
    %v872 = vmax.f32 %v869, %v870
    %v873 = vmax.f32 %v871, %v872
    %v874 = vrot.slane %v873, 4
    %v875 = vmax.f32 %v873, %v874
    %v876 = vrot.slane %v875, 2
    %v877 = vmax.f32 %v875, %v876
    %v878 = vrot.slane %v877, 1
    %v879 = vmax.f32 %v877, %v878
    %v880 = vsub.f32 %v858, %v879
    %v881 = vsub.f32 %v860, %v879
    %v882 = vsub.f32 %v863, %v879
    %v883 = vsub.f32 %v865, %v879
    %v884 = vmul.f32 %v880, 1.442695
    %v885 = vpow.pop %v884
    %v886 = vmul.f32 %v881, 1.442695
    %v887 = vpow.pop %v886
    %v888 = vmul.f32 %v882, 1.442695
    %v889 = vpow.pop %v888
    %v890 = vmul.f32 %v883, 1.442695
    %v891 = vpow.pop %v890
    %893 = vset.pattern.permute.xlu0 0
    %894 = vperm.xlu0 %893, %v885
    %v895 = vpop.permute.xlu0 %894
    %898 = vset.pattern.permute.xlu0 0
    %899 = vperm.xlu0 %898, %v887
    %v900 = vpop.permute.xlu0 %899
    %903 = vset.pattern.permute.xlu0 0
    %904 = vperm.xlu0 %903, %v889
    %v905 = vpop.permute.xlu0 %904
    %908 = vset.pattern.permute.xlu0 0
    %909 = vperm.xlu0 %908, %v891
    %v910 = vpop.permute.xlu0 %909
    %v912 = vmul.f32 %v895, %v765
    %v913 = vmul.f32 %v900, %v767
    %v914 = vmul.f32 %v905, %v770
    %v915 = vmul.f32 %v910, %v772
    %v916 = vpack.c.bf16 %v913, %v912
    %v917 = vpack.c.bf16 %v915, %v914
    %920 = vrot.lane.b32.xlu0 %v916, 120
    %v921 = vpop.permute.xlu0 %920
    %922 = vrot.lane.b32.xlu0 %v917, 120
    %v923 = vpop.permute.xlu0 %922
    %926 = vxpose.xlu0.c.b16.start [1/8] %v921, 128
    %927 = vxpose.xlu0.c.b16.cont [2/8] %v923, 128
    %928 = vxpose.xlu0.c.b16.cont [3/8] 0, 128
    %929 = vxpose.xlu0.c.b16.cont [4/8] 0, 128
    %930 = vxpose.xlu0.c.b16.cont [5/8] 0, 128
    %931 = vxpose.xlu0.c.b16.cont [6/8] 0, 128
    %932 = vxpose.xlu0.c.b16.cont [7/8] 0, 128
    %933 = vxpose.xlu0.c.b16.end [8/8] 0, 128
    %v934 = vpop.trf.xlu0
    %v935 = vpop.trf.xlu0
    %v936 = vpop.trf.xlu0
    %v937 = vpop.trf.xlu0
    %v938 = vpop.trf.xlu0
    %v939 = vpop.trf.xlu0
    %v940 = vpop.trf.xlu0
    %v941 = vpop.trf.xlu0
    %v943 = vsel %vm525, %v934, 0
    %v946 = vsel %vm525, %v935, 0
    %948 = vmatpush.bf16.msra.mxu0 0
    %949 = vmatpush.bf16.msra.mxu0 0
    %950 = vmatpush.bf16.msra.mxu0 0
    %951 = vmatpush.bf16.msra.mxu0 0
    %952 = vmatpush.bf16.msra.mxu0 0
    %953 = vmatpush.bf16.msra.mxu0 0
    %954 = vmatpush.bf16.msra.mxu0 %v304
    %955 = vmatpush.bf16.msra.mxu0 %v302
    %956 = vmatmul.bf16.gmra.mxu0 %v943
    %v957 = vpop.f32.mrf.mxu0
    %v958 = vadd.f32 0.0, %v957
    %v959 = vpop.f32.mrf.mxu0
    %v960 = vadd.f32 0.0, %v959
    %961 = vmatmul.bf16.gmra.mxu0 %v946
    %v962 = vpop.f32.mrf.mxu0
    %v963 = vadd.f32 0.0, %v962
    %v964 = vpop.f32.mrf.mxu0
    %965 = vdwg.mxu0
    %v966 = vmax.f32 %v963, 1e-20
    %v967 = vrcp.pop %v966
    %v968 = vperm.slane %v967, 0
    %v969 = vmul.f32 %v958, %v968
    %v970 = vmul.f32 %v960, %v968
    %v971 = vmax.f32 %v969, 0.0
    %v972 = vmax.f32 %v970, 0.0
    %v973 = vpack.c.bf16 %v972, %v971
    %s974 = scalar_lea.vmem [#allocation8], 16
    %v975 = vld [vmem:[%s974] sm:$0xf]
    %v976 = vld [vmem:[%s974 + $0x4] sm:$0xf]
    %977 = vxpose.xlu0.c.b16.start [1/8] %v973, 128
    %978 = vxpose.xlu0.c.b16.cont [2/8] 0, 128
    %979 = vxpose.xlu0.c.b16.cont [3/8] 0, 128
    %980 = vxpose.xlu0.c.b16.cont [4/8] 0, 128
    %981 = vxpose.xlu0.c.b16.cont [5/8] 0, 128
    %982 = vxpose.xlu0.c.b16.cont [6/8] 0, 128
    %983 = vxpose.xlu0.c.b16.cont [7/8] 0, 128
    %984 = vxpose.xlu0.c.b16.end [8/8] 0, 128
    %v985 = vpop.trf.xlu0
    %v986 = vpop.trf.xlu0
    %v987 = vpop.trf.xlu0
    %v988 = vpop.trf.xlu0
    %v989 = vpop.trf.xlu0
    %v990 = vpop.trf.xlu0
    %v991 = vpop.trf.xlu0
    %v992 = vpop.trf.xlu0
    %v995 = vunpack.c.l.b16 %v975
    %v996 = vunpack.c.l.b16 %v976
    %v997 = vpack.c.b16 %v996, %v995
    %v1000 = vsel %vm135, %v985, 0
    %v1003 = vsel %vm135, %v986, 0
    %v1006 = vsel %vm135, %v987, 0
    %v1009 = vsel %vm135, %v988, 0
    %v1012 = vsel %vm135, %v989, 0
    %v1015 = vsel %vm135, %v990, 0
    %v1018 = vsel %vm135, %v991, 0
    %v1021 = vsel %vm135, %v992, 0
    %1023 = vmatpush.bf16.msra.mxu0 0
    %1024 = vmatpush.bf16.msra.mxu0 0
    %1025 = vmatpush.bf16.msra.mxu0 0
    %1026 = vmatpush.bf16.msra.mxu0 0
    %1027 = vmatpush.bf16.msra.mxu0 0
    %1028 = vmatpush.bf16.msra.mxu0 0
    %1029 = vmatpush.bf16.msra.mxu0 0
    %1030 = vmatpush.bf16.msra.mxu0 %v997
    %1031 = vmatmul.bf16.gmra.mxu0 %v1000
    %v1032 = vpop.f32.mrf.mxu0
    %v1033 = vadd.f32 %v104, %v1032
    %v1034 = vpop.f32.mrf.mxu0
    %v1035 = vadd.f32 %v104, %v1034
    %1036 = vmatmul.bf16.gmra.mxu0 %v1003
    %v1037 = vpop.f32.mrf.mxu0
    %v1038 = vadd.f32 %v104, %v1037
    %v1039 = vpop.f32.mrf.mxu0
    %v1040 = vadd.f32 %v104, %v1039
    %1041 = vmatmul.bf16.gmra.mxu0 %v1006
    %v1042 = vpop.f32.mrf.mxu0
    %v1043 = vadd.f32 %v104, %v1042
    %v1044 = vpop.f32.mrf.mxu0
    %v1045 = vadd.f32 %v104, %v1044
    %1046 = vmatmul.bf16.gmra.mxu0 %v1009
    %v1047 = vpop.f32.mrf.mxu0
    %v1048 = vadd.f32 %v104, %v1047
    %v1049 = vpop.f32.mrf.mxu0
    %v1050 = vadd.f32 %v104, %v1049
    %1051 = vmatmul.bf16.gmra.mxu0 %v1012
    %v1052 = vpop.f32.mrf.mxu0
    %v1053 = vadd.f32 %v104, %v1052
    %v1054 = vpop.f32.mrf.mxu0
    %v1055 = vadd.f32 %v104, %v1054
    %1056 = vmatmul.bf16.gmra.mxu0 %v1015
    %v1057 = vpop.f32.mrf.mxu0
    %v1058 = vadd.f32 %v104, %v1057
    %v1059 = vpop.f32.mrf.mxu0
    %v1060 = vadd.f32 %v104, %v1059
    %1061 = vmatmul.bf16.gmra.mxu0 %v1018
    %v1062 = vpop.f32.mrf.mxu0
    %v1063 = vadd.f32 %v104, %v1062
    %v1064 = vpop.f32.mrf.mxu0
    %v1065 = vadd.f32 %v104, %v1064
    %1066 = vmatmul.bf16.gmra.mxu0 %v1021
    %v1067 = vpop.f32.mrf.mxu0
    %v1068 = vadd.f32 %v104, %v1067
    %v1069 = vpop.f32.mrf.mxu0
    %v1070 = vadd.f32 %v104, %v1069
    %1071 = vdwg.mxu0
    %1088 = vrot.lane.b32.xlu0 %v1033, 103
    %v1089 = vpop.permute.xlu0 %1088
    %1090 = vrot.lane.b32.xlu0 %v1035, 103
    %v1091 = vpop.permute.xlu0 %1090
    %1092 = vrot.lane.b32.xlu0 %v1038, 103
    %v1093 = vpop.permute.xlu0 %1092
    %1094 = vrot.lane.b32.xlu0 %v1040, 103
    %v1095 = vpop.permute.xlu0 %1094
    %1096 = vrot.lane.b32.xlu0 %v1043, 103
    %v1097 = vpop.permute.xlu0 %1096
    %1098 = vrot.lane.b32.xlu0 %v1045, 103
    %v1099 = vpop.permute.xlu0 %1098
    %1100 = vrot.lane.b32.xlu0 %v1048, 103
    %v1101 = vpop.permute.xlu0 %1100
    %1102 = vrot.lane.b32.xlu0 %v1050, 103
    %v1103 = vpop.permute.xlu0 %1102
    %1104 = vrot.lane.b32.xlu0 %v1053, 103
    %v1105 = vpop.permute.xlu0 %1104
    %1106 = vrot.lane.b32.xlu0 %v1055, 103
    %v1107 = vpop.permute.xlu0 %1106
    %1108 = vrot.lane.b32.xlu0 %v1058, 103
    %v1109 = vpop.permute.xlu0 %1108
    %1110 = vrot.lane.b32.xlu0 %v1060, 103
    %v1111 = vpop.permute.xlu0 %1110
    %1112 = vrot.lane.b32.xlu0 %v1063, 103
    %v1113 = vpop.permute.xlu0 %1112
    %1114 = vrot.lane.b32.xlu0 %v1065, 103
    %v1115 = vpop.permute.xlu0 %1114
    %1116 = vrot.lane.b32.xlu0 %v1068, 103
    %v1117 = vpop.permute.xlu0 %1116
    %1118 = vrot.lane.b32.xlu0 %v1070, 103
    %v1119 = vpop.permute.xlu0 %1118
    %v1136 = vpack.c.bf16 %v1035, %v1033
    %v1137 = vpack.c.bf16 %v1040, %v1038
    %v1138 = vpack.c.bf16 %v1045, %v1043
    %v1139 = vpack.c.bf16 %v1050, %v1048
    %v1140 = vpack.c.bf16 %v1055, %v1053
    %v1141 = vpack.c.bf16 %v1060, %v1058
    %v1142 = vpack.c.bf16 %v1065, %v1063
    %v1143 = vpack.c.bf16 %v1070, %v1068
    %v1144 = vpack.c.bf16 %v1091, %v1089
    %v1145 = vpack.c.bf16 %v1095, %v1093
    %v1146 = vpack.c.bf16 %v1099, %v1097
    %v1147 = vpack.c.bf16 %v1103, %v1101
    %v1148 = vpack.c.bf16 %v1107, %v1105
    %v1149 = vpack.c.bf16 %v1111, %v1109
    %v1150 = vpack.c.bf16 %v1115, %v1113
    %v1151 = vpack.c.bf16 %v1119, %v1117
    %1152 = vmatpush.bf16.msra.mxu0 %v1143
    %1153 = vmatpush.bf16.msra.mxu0 %v1142
    %1154 = vmatpush.bf16.msra.mxu0 %v1141
    %1155 = vmatpush.bf16.msra.mxu0 %v1140
    %1156 = vmatpush.bf16.msra.mxu0 %v1139
    %1157 = vmatpush.bf16.msra.mxu0 %v1138
    %1158 = vmatpush.bf16.msra.mxu0 %v1137
    %1159 = vmatpush.bf16.msra.mxu0 %v1136
    %1160 = vmatmul.bf16.gmra.mxu0 %v301
    %v1161 = vpop.f32.mrf.mxu0
    %v1162 = vadd.f32 0.0, %v1161
    %v1163 = vpop.f32.mrf.mxu0
    %v1164 = vadd.f32 0.0, %v1163
    %1165 = vmatmul.bf16.gmra.mxu0 %v303
    %v1166 = vpop.f32.mrf.mxu0
    %v1167 = vadd.f32 0.0, %v1166
    %v1168 = vpop.f32.mrf.mxu0
    %v1169 = vadd.f32 0.0, %v1168
    %1170 = vdwg.mxu0
    %1171 = vmatpush.bf16.msra.mxu0 %v1151
    %1172 = vmatpush.bf16.msra.mxu0 %v1150
    %1173 = vmatpush.bf16.msra.mxu0 %v1149
    %1174 = vmatpush.bf16.msra.mxu0 %v1148
    %1175 = vmatpush.bf16.msra.mxu0 %v1147
    %1176 = vmatpush.bf16.msra.mxu0 %v1146
    %1177 = vmatpush.bf16.msra.mxu0 %v1145
    %1178 = vmatpush.bf16.msra.mxu0 %v1144
    %1179 = vmatmul.bf16.gmra.mxu0 %v302
    %v1180 = vpop.f32.mrf.mxu0
    %v1181 = vadd.f32 %v1162, %v1180
    %v1182 = vpop.f32.mrf.mxu0
    %v1183 = vadd.f32 %v1164, %v1182
    %1184 = vmatmul.bf16.gmra.mxu0 %v304
    %v1185 = vpop.f32.mrf.mxu0
    %v1186 = vadd.f32 %v1167, %v1185
    %v1187 = vpop.f32.mrf.mxu0
    %v1188 = vadd.f32 %v1169, %v1187
    %1189 = vdwg.mxu0
    %s1190 = scalar_lea.vmem %s5, 8
    %v1191 = vld [vmem:[%s1190] sm:$0xf]
    %v1193 = vsel %vm358, %v833, 0
    %v1196 = vsel %vm358, %v834, 0
    %v1199 = vsel %vm365, %v1191, 0
    %1201 = vmatpush.bf16.msra.mxu0 0
    %1202 = vmatpush.bf16.msra.mxu0 0
    %1203 = vmatpush.bf16.msra.mxu0 0
    %1204 = vmatpush.bf16.msra.mxu0 0
    %1205 = vmatpush.bf16.msra.mxu0 0
    %1206 = vmatpush.bf16.msra.mxu0 0
    %1207 = vmatpush.bf16.msra.mxu0 0
    %1208 = vmatpush.bf16.msra.mxu0 %v1199
    %1209 = vmatmul.bf16.gmra.mxu0 %v1193
    %v1210 = vpop.f32.mrf.mxu0
    %v1211 = vadd.f32 0.0, %v1210
    %v1212 = vpop.f32.mrf.mxu0
    %v1213 = vadd.f32 0.0, %v1212
    %1214 = vmatmul.bf16.gmra.mxu0 %v1196
    %v1215 = vpop.f32.mrf.mxu0
    %v1216 = vadd.f32 0.0, %v1215
    %v1217 = vpop.f32.mrf.mxu0
    %v1218 = vadd.f32 0.0, %v1217
    %1219 = vdwg.mxu0
    %v1220 = vadd.f32 %v1181, %v1211
    %v1221 = vadd.f32 %v1183, %v1213
    %v1222 = vadd.f32 %v1186, %v1216
    %v1223 = vadd.f32 %v1188, %v1218
    %s1224 = scalar_lea.vmem %s7, 2
    %v1225 = vld [vmem:[%s1224] sm:$0x1]
    %v1227 = vperm.slane %v1225, 0
    %v1229 = vadd.f32 %v1220, %v1227
    %v1230 = vadd.f32 %v1221, %v1227
    %v1231 = vadd.f32 %v1222, %v1227
    %v1232 = vadd.f32 %v1223, %v1227
    %vm1233 = vcmp.gt.f32.partialorder %v1229, 0.0
    %vm1234 = vcmp.gt.f32.partialorder %v1230, 0.0
    %vm1235 = vcmp.gt.f32.partialorder %v1231, 0.0
    %vm1236 = vcmp.gt.f32.partialorder %v1232, 0.0
    %v1237 = vmul.f32 %v1229, 0.01
    %v1238 = vmul.f32 %v1230, 0.01
    %v1239 = vmul.f32 %v1231, 0.01
    %v1240 = vmul.f32 %v1232, 0.01
    %v1241 = vsel %vm1233, %v1229, %v1237
    %v1242 = vsel %vm1234, %v1230, %v1238
    %v1243 = vsel %vm1235, %v1231, %v1239
    %v1244 = vsel %vm1236, %v1232, %v1240
    %v1245 = vmax.f32 %v1241, 0.0
    %v1246 = vmax.f32 %v1242, 0.0
    %v1247 = vmax.f32 %v1243, 0.0
    %v1248 = vmax.f32 %v1244, 0.0
    %v1249 = vpack.c.bf16 %v1246, %v1245
    %v1250 = vpack.c.bf16 %v1248, %v1247
    %v1251 = vld [vmem:[%s8] sm:$0xf]
    %v1252 = vld [vmem:[%s9] sm:$0x1]
    %v1254 = vperm.slane %v1252, 0
    %v1257 = vsel %vm358, %v1249, 0
    %v1260 = vsel %vm358, %v1250, 0
    %v1263 = vsel %vm365, %v1251, 0
    %1265 = vmatpush.bf16.msra.mxu0 0
    %1266 = vmatpush.bf16.msra.mxu0 0
    %1267 = vmatpush.bf16.msra.mxu0 0
    %1268 = vmatpush.bf16.msra.mxu0 0
    %1269 = vmatpush.bf16.msra.mxu0 0
    %1270 = vmatpush.bf16.msra.mxu0 0
    %1271 = vmatpush.bf16.msra.mxu0 0
    %1272 = vmatpush.bf16.msra.mxu0 %v1263
    %1273 = vmatmul.bf16.gmra.mxu0 %v1257
    %v1274 = vpop.f32.mrf.mxu0
    %v1275 = vadd.f32 %v1254, %v1274
    %v1276 = vpop.f32.mrf.mxu0
    %v1277 = vadd.f32 %v1254, %v1276
    %1278 = vmatmul.bf16.gmra.mxu0 %v1260
    %v1279 = vpop.f32.mrf.mxu0
    %v1280 = vadd.f32 %v1254, %v1279
    %v1281 = vpop.f32.mrf.mxu0
    %v1282 = vadd.f32 %v1254, %v1281
    %1283 = vdwg.mxu0
    %vm1284 = vcmp.gt.f32.partialorder %v1275, 0.0
    %vm1285 = vcmp.gt.f32.partialorder %v1277, 0.0
    %vm1286 = vcmp.gt.f32.partialorder %v1280, 0.0
    %vm1287 = vcmp.gt.f32.partialorder %v1282, 0.0
    %v1288 = vmul.f32 %v1275, 1.442695
    %v1289 = vpow.pop %v1288
    %v1290 = vmul.f32 %v1277, 1.442695
    %v1291 = vpow.pop %v1290
    %v1292 = vmul.f32 %v1280, 1.442695
    %v1293 = vpow.pop %v1292
    %v1294 = vmul.f32 %v1282, 1.442695
    %v1295 = vpow.pop %v1294
    %v1296 = vsub.f32 %v1289, 1.0
    %v1297 = vsub.f32 %v1291, 1.0
    %v1298 = vsub.f32 %v1293, 1.0
    %v1299 = vsub.f32 %v1295, 1.0
    %v1300 = vmul.f32 %v1296, 1.6732632
    %v1301 = vmul.f32 %v1297, 1.6732632
    %v1302 = vmul.f32 %v1298, 1.6732632
    %v1303 = vmul.f32 %v1299, 1.6732632
    %v1304 = vsel %vm1284, %v1275, %v1300
    %v1305 = vsel %vm1285, %v1277, %v1301
    %v1306 = vsel %vm1286, %v1280, %v1302
    %v1307 = vsel %vm1287, %v1282, %v1303
    %v1308 = vmul.f32 %v1304, 1.050701
    %v1309 = vmul.f32 %v1305, 1.050701
    %v1310 = vmul.f32 %v1306, 1.050701
    %v1311 = vmul.f32 %v1307, 1.050701
    %v1312 = vpack.c.bf16 %v1309, %v1308
    %v1313 = vpack.c.bf16 %v1311, %v1310
    %v1314 = vld [vmem:[%s10] sm:$0xf]
    %v1315 = vld [vmem:[%s10 + $0x4] sm:$0xf]
    %v1316 = vld [vmem:[#allocation2] sm:$0x1]
    %v1318 = vperm.slane %v1316, 0
    %v1322 = vunpack.c.l.b16 %v1314
    %v1323 = vunpack.c.l.b16 %v1315
    %v1324 = vpack.c.b16 %v1323, %v1322
    %v1327 = vsel %vm135, %v1312, 0
    %v1330 = vsel %vm135, %v1313, 0
    %1332 = vmatpush.bf16.msra.mxu0 0
    %1333 = vmatpush.bf16.msra.mxu0 0
    %1334 = vmatpush.bf16.msra.mxu0 0
    %1335 = vmatpush.bf16.msra.mxu0 0
    %1336 = vmatpush.bf16.msra.mxu0 0
    %1337 = vmatpush.bf16.msra.mxu0 0
    %1338 = vmatpush.bf16.msra.mxu0 0
    %1339 = vmatpush.bf16.msra.mxu0 %v1324
    %1340 = vmatmul.bf16.gmra.mxu0 %v1327
    %v1341 = vpop.f32.mrf.mxu0
    %v1342 = vadd.f32 %v1318, %v1341
    %v1343 = vpop.f32.mrf.mxu0
    %v1344 = vadd.f32 %v1318, %v1343
    %1345 = vmatmul.bf16.gmra.mxu0 %v1330
    %v1346 = vpop.f32.mrf.mxu0
    %v1347 = vadd.f32 %v1318, %v1346
    %v1348 = vpop.f32.mrf.mxu0
    %v1349 = vadd.f32 %v1318, %v1348
    %1350 = vdwg.mxu0
    %v1351 = vpack.c.bf16 %v1344, %v1342
    %v1352 = vpack.c.bf16 %v1349, %v1347
    %1353 = vxpose.xlu0.c.b16.start [1/8] %v1351, 128
    %1354 = vxpose.xlu0.c.b16.cont [2/8] %v1352, 128
    %1355 = vxpose.xlu0.c.b16.cont [3/8] 0, 128
    %1356 = vxpose.xlu0.c.b16.cont [4/8] 0, 128
    %1357 = vxpose.xlu0.c.b16.cont [5/8] 0, 128
    %1358 = vxpose.xlu0.c.b16.cont [6/8] 0, 128
    %1359 = vxpose.xlu0.c.b16.cont [7/8] 0, 128
    %1360 = vxpose.xlu0.c.b16.end [8/8] 0, 128
    %v1361 = vpop.trf.xlu0
    %v1362 = vpop.trf.xlu0
    %v1363 = vpop.trf.xlu0
    %v1364 = vpop.trf.xlu0
    %v1365 = vpop.trf.xlu0
    %v1366 = vpop.trf.xlu0
    %v1367 = vpop.trf.xlu0
    %v1368 = vpop.trf.xlu0
    %v1370 = vsel %vm525, %v1361, 0
    %1372 = vmatpush.bf16.msra.mxu0 0
    %1373 = vmatpush.bf16.msra.mxu0 0
    %1374 = vmatpush.bf16.msra.mxu0 0
    %1375 = vmatpush.bf16.msra.mxu0 0
    %1376 = vmatpush.bf16.msra.mxu0 0
    %1377 = vmatpush.bf16.msra.mxu0 0
    %1378 = vmatpush.bf16.msra.mxu0 %v303
    %1379 = vmatpush.bf16.msra.mxu0 %v301
    %1380 = vmatmul.bf16.gmra.mxu0 %v1370
    %v1381 = vpop.f32.mrf.mxu0
    %v1382 = vadd.f32 0.0, %v1381
    %v1383 = vpop.f32.mrf.mxu0
    %1384 = vdwg.mxu0
    %1385 = vmatpush.bf16.msra.mxu0 0
    %1386 = vmatpush.bf16.msra.mxu0 0
    %1387 = vmatpush.bf16.msra.mxu0 0
    %1388 = vmatpush.bf16.msra.mxu0 0
    %1389 = vmatpush.bf16.msra.mxu0 0
    %1390 = vmatpush.bf16.msra.mxu0 0
    %1391 = vmatpush.bf16.msra.mxu0 %v304
    %1392 = vmatpush.bf16.msra.mxu0 %v302
    %1393 = vmatmul.bf16.gmra.mxu0 %v1370
    %v1394 = vpop.f32.mrf.mxu0
    %v1395 = vadd.f32 0.0, %v1394
    %v1396 = vpop.f32.mrf.mxu0
    %1397 = vdwg.mxu0
    %v1398 = vsub.f32 %v1395, %v1382
    %v1399 = vld [vmem:[#allocation6] sm:$0x1]
    %v1400 = vadd.f32 %v1398, %v1399
    %1401 = vst [vmem:[#allocation9] sm:$0x1] %v1400
    // Predicated region
    $region62: #{tpu_custom_call.1} parent=1 // pred_check
      _
    $region63: #{tpu_custom_call.1} parent=1 // pred_check_branch
      %1403 = sbr.rel (0) target = $region65
    $region64: #{tpu_custom_call.1} parent=1 // pred_region
      %1405 = vsyncadd [#allocation5], 0
      %s1407 = sshll.u32 [#allocation9], 4
      %s1408 = int_to_ptr.vmem [resolvable:$true] %s1407
      %s1409 = sshll.u32 %s12, 4
      %s1410 = int_to_ptr.hbm [resolvable:$true] %s1409
      %1412 = dma.vmem_to_hbm [thread:$0]  %s1408, 16, %s1410, [#allocation5]
    $region65: #{tpu_custom_call.1} parent=1 // pred_fallthru
      _
    // Predicated region
    $region66: #{tpu_custom_call.1} parent=1 // pred_check
      _
    $region67: #{tpu_custom_call.1} parent=1 // pred_check_branch
      %1414 = sbr.rel (0) target = $region69
    $region68: #{tpu_custom_call.1} parent=1 // pred_region
      %1416 = dma.done [#allocation5], 16
    $region69: #{tpu_custom_call.1} parent=1 // pred_fallthru
      _
    %1417 = vsyncpa [#allocation4], 1
    %1418 = vsyncpa [#allocation7], 1
    %1419 = vsyncpa [#allocation5], 1

</llo_original>
